<compile_context>
chip_gen: v7x
topology: tpu7x:2x2x1
jax: 0.10.0
libtpu: 0.0.40
codegen_flags: <defaults>
</compile_context>

<pallas_src>
import jax
import jax.numpy as jnp
from jax.experimental import pallas as pl
from jax.experimental.pallas import tpu as pltpu


def lstm_fc_kernel(xf_ref, wih0_ref, whh0_ref, b0_ref,
                   w1_ref, b1_ref, wfc_ref, bfc_ref, out_ref):
    # Static shapes:
    #   xf_ref:   (T*B, I)   time-major flattened input
    #   wih0_ref: (I, 4H)    layer-0 input weights (pre-transposed)
    #   whh0_ref: (H, 4H)    layer-0 recurrent weights (pre-transposed)
    #   b0_ref:   (1, 4H)    b_ih_l0 + b_hh_l0
    #   w1_ref:   (2H, 4H)   [W_ih_l1.T ; W_hh_l1.T] stacked rows
    #   b1_ref:   (1, 4H)    b_ih_l1 + b_hh_l1
    #   wfc_ref:  (H, O)     FC weights (pre-transposed)
    #   bfc_ref:  (1, O)
    B = out_ref.shape[0]
    H = whh0_ref.shape[0]
    T = xf_ref.shape[0] // B

    whh0 = whh0_ref[...]
    w1 = w1_ref[...]
    b1 = b1_ref[...]

    # Layer-0 input projection for ALL timesteps at once: one MXU matmul
    # hoisted off the serial critical path (bias folded in here too).
    xproj = (jnp.dot(xf_ref[...], wih0_ref[...],
                     preferred_element_type=jnp.float32)
             + b0_ref[...])                                   # (T*B, 4H)

    def lstm_update(gates, c):
        # Full-width (B, 4H) activations: two EUP passes instead of four
        # lane-masked quarter passes.  PyTorch gate order: i, f, g, o.
        sig = jax.nn.sigmoid(gates)
        tnh = jnp.tanh(gates)
        i = sig[:, 0 * H:1 * H]
        f = sig[:, 1 * H:2 * H]
        g = tnh[:, 2 * H:3 * H]
        o = sig[:, 3 * H:4 * H]
        c_new = f * c + i * g
        h_new = o * jnp.tanh(c_new)
        return h_new, c_new

    zeros = jnp.zeros((B, H), jnp.float32)
    h0, c0, h1, c1 = zeros, zeros, zeros, zeros

    # T is a small trace-time constant -> fully unrolled recurrence; all
    # slices below are static.
    for t in range(T):
        # layer 0: only the recurrent matmul remains per step
        gates0 = xproj[t * B:(t + 1) * B, :] + jnp.dot(
            h0, whh0, preferred_element_type=jnp.float32)
        h0, c0 = lstm_update(gates0, c0)

        # layer 1: single fused matmul of [h0 | h1] against stacked weights
        hcat = jnp.concatenate([h0, h1], axis=-1)             # (B, 2H)
        gates1 = jnp.dot(hcat, w1, preferred_element_type=jnp.float32) + b1
        h1, c1 = lstm_update(gates1, c1)

    out = (jnp.dot(h1, wfc_ref[...], preferred_element_type=jnp.float32)
           + bfc_ref[...])
    out_ref[...] = out.astype(out_ref.dtype)


def quad_lstm_forward(x, params):
    """x: (B, T, input_size) float32, batch_first like the PyTorch module."""
    B, T, I = x.shape
    out_size = params["w_fc"].shape[0]

    # Time-major flatten in the wrapper (XLA), so the kernel never reshapes.
    x_flat = jnp.transpose(x, (1, 0, 2)).reshape(T * B, I).astype(jnp.float32)

    args = (
        x_flat,
        params["w_ih_l0"].T.astype(jnp.float32),
        params["w_hh_l0"].T.astype(jnp.float32),
        (params["b_ih_l0"] + params["b_hh_l0"])[None, :].astype(jnp.float32),
        jnp.concatenate([params["w_ih_l1"].T, params["w_hh_l1"].T],
                        axis=0).astype(jnp.float32),
        (params["b_ih_l1"] + params["b_hh_l1"])[None, :].astype(jnp.float32),
        params["w_fc"].T.astype(jnp.float32),
        params["b_fc"][None, :].astype(jnp.float32),
    )

    vmem = pl.BlockSpec(memory_space=pltpu.MemorySpace.VMEM)
    return pl.pallas_call(
        lstm_fc_kernel,
        out_shape=jax.ShapeDtypeStruct((B, out_size), jnp.float32),
        in_specs=[vmem] * len(args),
        out_specs=vmem,
    )(*args)


def init_params(key, input_size, hidden_size, output_size):
    """Deterministic init matching the PyTorch parameter shapes."""
    H = hidden_size
    bound = 1.0 / jnp.sqrt(jnp.float32(H))
    ks = jax.random.split(key, 10)

    def u(k, shape):
        return jax.random.uniform(k, shape, jnp.float32, -bound, bound)

    return dict(
        w_ih_l0=u(ks[0], (4 * H, input_size)),
        w_hh_l0=u(ks[1], (4 * H, H)),
        b_ih_l0=u(ks[2], (4 * H,)),
        b_hh_l0=u(ks[3], (4 * H,)),
        w_ih_l1=u(ks[4], (4 * H, H)),
        w_hh_l1=u(ks[5], (4 * H, H)),
        b_ih_l1=u(ks[6], (4 * H,)),
        b_hh_l1=u(ks[7], (4 * H,)),
        w_fc=u(ks[8], (output_size, H)),
        b_fc=u(ks[9], (output_size,)),
    )


def reference_forward(x, params):
    """Pure-JAX reference of the PyTorch forward (for verification)."""
    B, T, _ = x.shape
    H = params["w_hh_l0"].shape[1]

    def cell(x_t, h, c, wih, whh, bih, bhh):
        gates = x_t @ wih.T + bih + h @ whh.T + bhh
        i, f, g, o = jnp.split(gates, 4, axis=-1)
        i = jax.nn.sigmoid(i)
        f = jax.nn.sigmoid(f)
        g = jnp.tanh(g)
        o = jax.nn.sigmoid(o)
        c = f * c + i * g
        h = o * jnp.tanh(c)
        return h, c

    h0 = c0 = h1 = c1 = jnp.zeros((B, H), jnp.float32)
    for t in range(T):
        h0, c0 = cell(x[:, t, :], h0, c0,
                      params["w_ih_l0"], params["w_hh_l0"],
                      params["b_ih_l0"], params["b_hh_l0"])
        h1, c1 = cell(h0, h1, c1,
                      params["w_ih_l1"], params["w_hh_l1"],
                      params["b_ih_l1"], params["b_hh_l1"])
    return h1 @ params["w_fc"].T + params["b_fc"]


if __name__ == "__main__":
    B, T, INPUT_SIZE = 2, 8, 4
    HIDDEN, OUTPUT = 32, 1

    key = jax.random.PRNGKey(0)
    k_x, k_p = jax.random.split(key)
    x = jax.random.normal(k_x, (B, T, INPUT_SIZE), jnp.float32)
    params = init_params(k_p, INPUT_SIZE, HIDDEN, OUTPUT)

    out = quad_lstm_forward(x, params)
    out = jax.block_until_ready(out)

    ref = reference_forward(x, params)
    assert out.shape == (B, OUTPUT), out.shape
    assert jnp.allclose(out, ref, atol=1e-5, rtol=1e-5), (out, ref)

    print("KERNEL_OK")
</pallas_src>

<mosaic_0001>
module attributes {stable_mosaic.version = 11 : i64} {
  func.func @lstm_fc_kernel(%arg0: memref<16x4xf32, #tpu.memory_space<vmem>>, %arg1: memref<4x128xf32, #tpu.memory_space<vmem>>, %arg2: memref<32x128xf32, #tpu.memory_space<vmem>>, %arg3: memref<1x128xf32, #tpu.memory_space<vmem>>, %arg4: memref<64x128xf32, #tpu.memory_space<vmem>>, %arg5: memref<1x128xf32, #tpu.memory_space<vmem>>, %arg6: memref<32x1xf32, #tpu.memory_space<vmem>>, %arg7: memref<1x1xf32, #tpu.memory_space<vmem>>, %arg8: memref<2x1xf32, #tpu.memory_space<vmem>>) attributes {dimension_semantics = [], scalar_prefetch = 0 : i64, scratch_operands = 0 : i64, tpu.core_type = #tpu.core_type<tc>} {
    %c0 = arith.constant 0 : index
    %c0_0 = arith.constant 0 : index
    %0 = vector.load %arg2[%c0, %c0_0] : memref<32x128xf32, #tpu.memory_space<vmem>>, vector<32x128xf32>
    %c0_1 = arith.constant 0 : index
    %c0_2 = arith.constant 0 : index
    %1 = vector.load %arg4[%c0_1, %c0_2] : memref<64x128xf32, #tpu.memory_space<vmem>>, vector<64x128xf32>
    %c0_3 = arith.constant 0 : index
    %c0_4 = arith.constant 0 : index
    %2 = vector.load %arg5[%c0_3, %c0_4] : memref<1x128xf32, #tpu.memory_space<vmem>>, vector<1x128xf32>
    %c0_5 = arith.constant 0 : index
    %c0_6 = arith.constant 0 : index
    %3 = vector.load %arg0[%c0_5, %c0_6] : memref<16x4xf32, #tpu.memory_space<vmem>>, vector<16x4xf32>
    %c0_7 = arith.constant 0 : index
    %c0_8 = arith.constant 0 : index
    %4 = vector.load %arg1[%c0_7, %c0_8] : memref<4x128xf32, #tpu.memory_space<vmem>>, vector<4x128xf32>
    %cst = arith.constant dense<0.000000e+00> : vector<16x128xf32>
    %5 = tpu.matmul %3, %4, %cst {dimension_numbers = #tpu.dot_dimension_numbers<[1], [0], [0], [1], [0, 0, 1, 1], [], []>} : vector<16x4xf32>, vector<4x128xf32>, vector<16x128xf32> -> vector<16x128xf32>
    %c0_9 = arith.constant 0 : index
    %c0_10 = arith.constant 0 : index
    %6 = vector.load %arg3[%c0_9, %c0_10] : memref<1x128xf32, #tpu.memory_space<vmem>>, vector<1x128xf32>
    %7 = vector.broadcast %6 : vector<1x128xf32> to vector<16x128xf32>
    %8 = arith.addf %5, %7 : vector<16x128xf32>
    %cst_11 = arith.constant 0.000000e+00 : f32
    %9 = vector.broadcast %cst_11 : f32 to vector<2x32xf32>
    %10 = vector.extract_strided_slice %8 {offsets = [0, 0], sizes = [2, 128], strides = [1, 1]} : vector<16x128xf32> to vector<2x128xf32>
    %cst_12 = arith.constant dense<0.000000e+00> : vector<2x128xf32>
    %11 = tpu.matmul %9, %0, %cst_12 {dimension_numbers = #tpu.dot_dimension_numbers<[1], [0], [0], [1], [0, 0, 1, 1], [], []>} : vector<2x32xf32>, vector<32x128xf32>, vector<2x128xf32> -> vector<2x128xf32>
    %12 = arith.addf %10, %11 : vector<2x128xf32>
    %13 = arith.negf %12 : vector<2x128xf32>
    %14 = math.exp %13 : vector<2x128xf32>
    %cst_13 = arith.constant 1.000000e+00 : f32
    %15 = vector.broadcast %cst_13 : f32 to vector<2x128xf32>
    %16 = arith.addf %15, %14 : vector<2x128xf32>
    %17 = arith.divf %15, %16 : vector<2x128xf32>
    %18 = math.tanh %12 : vector<2x128xf32>
    %19 = vector.extract_strided_slice %17 {offsets = [0, 0], sizes = [2, 32], strides = [1, 1]} : vector<2x128xf32> to vector<2x32xf32>
    %20 = vector.extract_strided_slice %17 {offsets = [0, 32], sizes = [2, 32], strides = [1, 1]} : vector<2x128xf32> to vector<2x32xf32>
    %21 = vector.extract_strided_slice %18 {offsets = [0, 64], sizes = [2, 32], strides = [1, 1]} : vector<2x128xf32> to vector<2x32xf32>
    %22 = vector.extract_strided_slice %17 {offsets = [0, 96], sizes = [2, 32], strides = [1, 1]} : vector<2x128xf32> to vector<2x32xf32>
    %23 = arith.mulf %20, %9 : vector<2x32xf32>
    %24 = arith.mulf %19, %21 : vector<2x32xf32>
    %25 = arith.addf %23, %24 : vector<2x32xf32>
    %26 = math.tanh %25 : vector<2x32xf32>
    %27 = arith.mulf %22, %26 : vector<2x32xf32>
    %28 = tpu.concatenate %27, %9 in 1 : vector<2x32xf32>, vector<2x32xf32> -> vector<2x64xf32>
    %cst_14 = arith.constant dense<0.000000e+00> : vector<2x128xf32>
    %29 = tpu.matmul %28, %1, %cst_14 {dimension_numbers = #tpu.dot_dimension_numbers<[1], [0], [0], [1], [0, 0, 1, 1], [], []>} : vector<2x64xf32>, vector<64x128xf32>, vector<2x128xf32> -> vector<2x128xf32>
    %30 = vector.broadcast %2 : vector<1x128xf32> to vector<2x128xf32>
    %31 = arith.addf %29, %30 : vector<2x128xf32>
    %32 = arith.negf %31 : vector<2x128xf32>
    %33 = math.exp %32 : vector<2x128xf32>
    %cst_15 = arith.constant 1.000000e+00 : f32
    %34 = vector.broadcast %cst_15 : f32 to vector<2x128xf32>
    %35 = arith.addf %34, %33 : vector<2x128xf32>
    %36 = arith.divf %34, %35 : vector<2x128xf32>
    %37 = math.tanh %31 : vector<2x128xf32>
    %38 = vector.extract_strided_slice %36 {offsets = [0, 0], sizes = [2, 32], strides = [1, 1]} : vector<2x128xf32> to vector<2x32xf32>
    %39 = vector.extract_strided_slice %36 {offsets = [0, 32], sizes = [2, 32], strides = [1, 1]} : vector<2x128xf32> to vector<2x32xf32>
    %40 = vector.extract_strided_slice %37 {offsets = [0, 64], sizes = [2, 32], strides = [1, 1]} : vector<2x128xf32> to vector<2x32xf32>
    %41 = vector.extract_strided_slice %36 {offsets = [0, 96], sizes = [2, 32], strides = [1, 1]} : vector<2x128xf32> to vector<2x32xf32>
    %42 = arith.mulf %39, %9 : vector<2x32xf32>
    %43 = arith.mulf %38, %40 : vector<2x32xf32>
    %44 = arith.addf %42, %43 : vector<2x32xf32>
    %45 = math.tanh %44 : vector<2x32xf32>
    %46 = arith.mulf %41, %45 : vector<2x32xf32>
    %47 = vector.extract_strided_slice %8 {offsets = [2, 0], sizes = [2, 128], strides = [1, 1]} : vector<16x128xf32> to vector<2x128xf32>
    %cst_16 = arith.constant dense<0.000000e+00> : vector<2x128xf32>
    %48 = tpu.matmul %27, %0, %cst_16 {dimension_numbers = #tpu.dot_dimension_numbers<[1], [0], [0], [1], [0, 0, 1, 1], [], []>} : vector<2x32xf32>, vector<32x128xf32>, vector<2x128xf32> -> vector<2x128xf32>
    %49 = arith.addf %47, %48 : vector<2x128xf32>
    %50 = arith.negf %49 : vector<2x128xf32>
    %51 = math.exp %50 : vector<2x128xf32>
    %cst_17 = arith.constant 1.000000e+00 : f32
    %52 = vector.broadcast %cst_17 : f32 to vector<2x128xf32>
    %53 = arith.addf %52, %51 : vector<2x128xf32>
    %54 = arith.divf %52, %53 : vector<2x128xf32>
    %55 = math.tanh %49 : vector<2x128xf32>
    %56 = vector.extract_strided_slice %54 {offsets = [0, 0], sizes = [2, 32], strides = [1, 1]} : vector<2x128xf32> to vector<2x32xf32>
    %57 = vector.extract_strided_slice %54 {offsets = [0, 32], sizes = [2, 32], strides = [1, 1]} : vector<2x128xf32> to vector<2x32xf32>
    %58 = vector.extract_strided_slice %55 {offsets = [0, 64], sizes = [2, 32], strides = [1, 1]} : vector<2x128xf32> to vector<2x32xf32>
    %59 = vector.extract_strided_slice %54 {offsets = [0, 96], sizes = [2, 32], strides = [1, 1]} : vector<2x128xf32> to vector<2x32xf32>
    %60 = arith.mulf %57, %25 : vector<2x32xf32>
    %61 = arith.mulf %56, %58 : vector<2x32xf32>
    %62 = arith.addf %60, %61 : vector<2x32xf32>
    %63 = math.tanh %62 : vector<2x32xf32>
    %64 = arith.mulf %59, %63 : vector<2x32xf32>
    %65 = tpu.concatenate %64, %46 in 1 : vector<2x32xf32>, vector<2x32xf32> -> vector<2x64xf32>
    %cst_18 = arith.constant dense<0.000000e+00> : vector<2x128xf32>
    %66 = tpu.matmul %65, %1, %cst_18 {dimension_numbers = #tpu.dot_dimension_numbers<[1], [0], [0], [1], [0, 0, 1, 1], [], []>} : vector<2x64xf32>, vector<64x128xf32>, vector<2x128xf32> -> vector<2x128xf32>
    %67 = vector.broadcast %2 : vector<1x128xf32> to vector<2x128xf32>
    %68 = arith.addf %66, %67 : vector<2x128xf32>
    %69 = arith.negf %68 : vector<2x128xf32>
    %70 = math.exp %69 : vector<2x128xf32>
    %cst_19 = arith.constant 1.000000e+00 : f32
    %71 = vector.broadcast %cst_19 : f32 to vector<2x128xf32>
    %72 = arith.addf %71, %70 : vector<2x128xf32>
    %73 = arith.divf %71, %72 : vector<2x128xf32>
    %74 = math.tanh %68 : vector<2x128xf32>
    %75 = vector.extract_strided_slice %73 {offsets = [0, 0], sizes = [2, 32], strides = [1, 1]} : vector<2x128xf32> to vector<2x32xf32>
    %76 = vector.extract_strided_slice %73 {offsets = [0, 32], sizes = [2, 32], strides = [1, 1]} : vector<2x128xf32> to vector<2x32xf32>
    %77 = vector.extract_strided_slice %74 {offsets = [0, 64], sizes = [2, 32], strides = [1, 1]} : vector<2x128xf32> to vector<2x32xf32>
    %78 = vector.extract_strided_slice %73 {offsets = [0, 96], sizes = [2, 32], strides = [1, 1]} : vector<2x128xf32> to vector<2x32xf32>
    %79 = arith.mulf %76, %44 : vector<2x32xf32>
    %80 = arith.mulf %75, %77 : vector<2x32xf32>
    %81 = arith.addf %79, %80 : vector<2x32xf32>
    %82 = math.tanh %81 : vector<2x32xf32>
    %83 = arith.mulf %78, %82 : vector<2x32xf32>
    %84 = vector.extract_strided_slice %8 {offsets = [4, 0], sizes = [2, 128], strides = [1, 1]} : vector<16x128xf32> to vector<2x128xf32>
    %cst_20 = arith.constant dense<0.000000e+00> : vector<2x128xf32>
    %85 = tpu.matmul %64, %0, %cst_20 {dimension_numbers = #tpu.dot_dimension_numbers<[1], [0], [0], [1], [0, 0, 1, 1], [], []>} : vector<2x32xf32>, vector<32x128xf32>, vector<2x128xf32> -> vector<2x128xf32>
    %86 = arith.addf %84, %85 : vector<2x128xf32>
    %87 = arith.negf %86 : vector<2x128xf32>
    %88 = math.exp %87 : vector<2x128xf32>
    %cst_21 = arith.constant 1.000000e+00 : f32
    %89 = vector.broadcast %cst_21 : f32 to vector<2x128xf32>
    %90 = arith.addf %89, %88 : vector<2x128xf32>
    %91 = arith.divf %89, %90 : vector<2x128xf32>
    %92 = math.tanh %86 : vector<2x128xf32>
    %93 = vector.extract_strided_slice %91 {offsets = [0, 0], sizes = [2, 32], strides = [1, 1]} : vector<2x128xf32> to vector<2x32xf32>
    %94 = vector.extract_strided_slice %91 {offsets = [0, 32], sizes = [2, 32], strides = [1, 1]} : vector<2x128xf32> to vector<2x32xf32>
    %95 = vector.extract_strided_slice %92 {offsets = [0, 64], sizes = [2, 32], strides = [1, 1]} : vector<2x128xf32> to vector<2x32xf32>
    %96 = vector.extract_strided_slice %91 {offsets = [0, 96], sizes = [2, 32], strides = [1, 1]} : vector<2x128xf32> to vector<2x32xf32>
    %97 = arith.mulf %94, %62 : vector<2x32xf32>
    %98 = arith.mulf %93, %95 : vector<2x32xf32>
    %99 = arith.addf %97, %98 : vector<2x32xf32>
    %100 = math.tanh %99 : vector<2x32xf32>
    %101 = arith.mulf %96, %100 : vector<2x32xf32>
    %102 = tpu.concatenate %101, %83 in 1 : vector<2x32xf32>, vector<2x32xf32> -> vector<2x64xf32>
    %cst_22 = arith.constant dense<0.000000e+00> : vector<2x128xf32>
    %103 = tpu.matmul %102, %1, %cst_22 {dimension_numbers = #tpu.dot_dimension_numbers<[1], [0], [0], [1], [0, 0, 1, 1], [], []>} : vector<2x64xf32>, vector<64x128xf32>, vector<2x128xf32> -> vector<2x128xf32>
    %104 = vector.broadcast %2 : vector<1x128xf32> to vector<2x128xf32>
    %105 = arith.addf %103, %104 : vector<2x128xf32>
    %106 = arith.negf %105 : vector<2x128xf32>
    %107 = math.exp %106 : vector<2x128xf32>
    %cst_23 = arith.constant 1.000000e+00 : f32
    %108 = vector.broadcast %cst_23 : f32 to vector<2x128xf32>
    %109 = arith.addf %108, %107 : vector<2x128xf32>
    %110 = arith.divf %108, %109 : vector<2x128xf32>
    %111 = math.tanh %105 : vector<2x128xf32>
    %112 = vector.extract_strided_slice %110 {offsets = [0, 0], sizes = [2, 32], strides = [1, 1]} : vector<2x128xf32> to vector<2x32xf32>
    %113 = vector.extract_strided_slice %110 {offsets = [0, 32], sizes = [2, 32], strides = [1, 1]} : vector<2x128xf32> to vector<2x32xf32>
    %114 = vector.extract_strided_slice %111 {offsets = [0, 64], sizes = [2, 32], strides = [1, 1]} : vector<2x128xf32> to vector<2x32xf32>
    %115 = vector.extract_strided_slice %110 {offsets = [0, 96], sizes = [2, 32], strides = [1, 1]} : vector<2x128xf32> to vector<2x32xf32>
    %116 = arith.mulf %113, %81 : vector<2x32xf32>
    %117 = arith.mulf %112, %114 : vector<2x32xf32>
    %118 = arith.addf %116, %117 : vector<2x32xf32>
    %119 = math.tanh %118 : vector<2x32xf32>
    %120 = arith.mulf %115, %119 : vector<2x32xf32>
    %121 = vector.extract_strided_slice %8 {offsets = [6, 0], sizes = [2, 128], strides = [1, 1]} : vector<16x128xf32> to vector<2x128xf32>
    %cst_24 = arith.constant dense<0.000000e+00> : vector<2x128xf32>
    %122 = tpu.matmul %101, %0, %cst_24 {dimension_numbers = #tpu.dot_dimension_numbers<[1], [0], [0], [1], [0, 0, 1, 1], [], []>} : vector<2x32xf32>, vector<32x128xf32>, vector<2x128xf32> -> vector<2x128xf32>
    %123 = arith.addf %121, %122 : vector<2x128xf32>
    %124 = arith.negf %123 : vector<2x128xf32>
    %125 = math.exp %124 : vector<2x128xf32>
    %cst_25 = arith.constant 1.000000e+00 : f32
    %126 = vector.broadcast %cst_25 : f32 to vector<2x128xf32>
    %127 = arith.addf %126, %125 : vector<2x128xf32>
    %128 = arith.divf %126, %127 : vector<2x128xf32>
    %129 = math.tanh %123 : vector<2x128xf32>
    %130 = vector.extract_strided_slice %128 {offsets = [0, 0], sizes = [2, 32], strides = [1, 1]} : vector<2x128xf32> to vector<2x32xf32>
    %131 = vector.extract_strided_slice %128 {offsets = [0, 32], sizes = [2, 32], strides = [1, 1]} : vector<2x128xf32> to vector<2x32xf32>
    %132 = vector.extract_strided_slice %129 {offsets = [0, 64], sizes = [2, 32], strides = [1, 1]} : vector<2x128xf32> to vector<2x32xf32>
    %133 = vector.extract_strided_slice %128 {offsets = [0, 96], sizes = [2, 32], strides = [1, 1]} : vector<2x128xf32> to vector<2x32xf32>
    %134 = arith.mulf %131, %99 : vector<2x32xf32>
    %135 = arith.mulf %130, %132 : vector<2x32xf32>
    %136 = arith.addf %134, %135 : vector<2x32xf32>
    %137 = math.tanh %136 : vector<2x32xf32>
    %138 = arith.mulf %133, %137 : vector<2x32xf32>
    %139 = tpu.concatenate %138, %120 in 1 : vector<2x32xf32>, vector<2x32xf32> -> vector<2x64xf32>
    %cst_26 = arith.constant dense<0.000000e+00> : vector<2x128xf32>
    %140 = tpu.matmul %139, %1, %cst_26 {dimension_numbers = #tpu.dot_dimension_numbers<[1], [0], [0], [1], [0, 0, 1, 1], [], []>} : vector<2x64xf32>, vector<64x128xf32>, vector<2x128xf32> -> vector<2x128xf32>
    %141 = vector.broadcast %2 : vector<1x128xf32> to vector<2x128xf32>
    %142 = arith.addf %140, %141 : vector<2x128xf32>
    %143 = arith.negf %142 : vector<2x128xf32>
    %144 = math.exp %143 : vector<2x128xf32>
    %cst_27 = arith.constant 1.000000e+00 : f32
    %145 = vector.broadcast %cst_27 : f32 to vector<2x128xf32>
    %146 = arith.addf %145, %144 : vector<2x128xf32>
    %147 = arith.divf %145, %146 : vector<2x128xf32>
    %148 = math.tanh %142 : vector<2x128xf32>
    %149 = vector.extract_strided_slice %147 {offsets = [0, 0], sizes = [2, 32], strides = [1, 1]} : vector<2x128xf32> to vector<2x32xf32>
    %150 = vector.extract_strided_slice %147 {offsets = [0, 32], sizes = [2, 32], strides = [1, 1]} : vector<2x128xf32> to vector<2x32xf32>
    %151 = vector.extract_strided_slice %148 {offsets = [0, 64], sizes = [2, 32], strides = [1, 1]} : vector<2x128xf32> to vector<2x32xf32>
    %152 = vector.extract_strided_slice %147 {offsets = [0, 96], sizes = [2, 32], strides = [1, 1]} : vector<2x128xf32> to vector<2x32xf32>
    %153 = arith.mulf %150, %118 : vector<2x32xf32>
    %154 = arith.mulf %149, %151 : vector<2x32xf32>
    %155 = arith.addf %153, %154 : vector<2x32xf32>
    %156 = math.tanh %155 : vector<2x32xf32>
    %157 = arith.mulf %152, %156 : vector<2x32xf32>
    %158 = vector.extract_strided_slice %8 {offsets = [8, 0], sizes = [2, 128], strides = [1, 1]} : vector<16x128xf32> to vector<2x128xf32>
    %cst_28 = arith.constant dense<0.000000e+00> : vector<2x128xf32>
    %159 = tpu.matmul %138, %0, %cst_28 {dimension_numbers = #tpu.dot_dimension_numbers<[1], [0], [0], [1], [0, 0, 1, 1], [], []>} : vector<2x32xf32>, vector<32x128xf32>, vector<2x128xf32> -> vector<2x128xf32>
    %160 = arith.addf %158, %159 : vector<2x128xf32>
    %161 = arith.negf %160 : vector<2x128xf32>
    %162 = math.exp %161 : vector<2x128xf32>
    %cst_29 = arith.constant 1.000000e+00 : f32
    %163 = vector.broadcast %cst_29 : f32 to vector<2x128xf32>
    %164 = arith.addf %163, %162 : vector<2x128xf32>
    %165 = arith.divf %163, %164 : vector<2x128xf32>
    %166 = math.tanh %160 : vector<2x128xf32>
    %167 = vector.extract_strided_slice %165 {offsets = [0, 0], sizes = [2, 32], strides = [1, 1]} : vector<2x128xf32> to vector<2x32xf32>
    %168 = vector.extract_strided_slice %165 {offsets = [0, 32], sizes = [2, 32], strides = [1, 1]} : vector<2x128xf32> to vector<2x32xf32>
    %169 = vector.extract_strided_slice %166 {offsets = [0, 64], sizes = [2, 32], strides = [1, 1]} : vector<2x128xf32> to vector<2x32xf32>
    %170 = vector.extract_strided_slice %165 {offsets = [0, 96], sizes = [2, 32], strides = [1, 1]} : vector<2x128xf32> to vector<2x32xf32>
    %171 = arith.mulf %168, %136 : vector<2x32xf32>
    %172 = arith.mulf %167, %169 : vector<2x32xf32>
    %173 = arith.addf %171, %172 : vector<2x32xf32>
    %174 = math.tanh %173 : vector<2x32xf32>
    %175 = arith.mulf %170, %174 : vector<2x32xf32>
    %176 = tpu.concatenate %175, %157 in 1 : vector<2x32xf32>, vector<2x32xf32> -> vector<2x64xf32>
    %cst_30 = arith.constant dense<0.000000e+00> : vector<2x128xf32>
    %177 = tpu.matmul %176, %1, %cst_30 {dimension_numbers = #tpu.dot_dimension_numbers<[1], [0], [0], [1], [0, 0, 1, 1], [], []>} : vector<2x64xf32>, vector<64x128xf32>, vector<2x128xf32> -> vector<2x128xf32>
    %178 = vector.broadcast %2 : vector<1x128xf32> to vector<2x128xf32>
    %179 = arith.addf %177, %178 : vector<2x128xf32>
    %180 = arith.negf %179 : vector<2x128xf32>
    %181 = math.exp %180 : vector<2x128xf32>
    %cst_31 = arith.constant 1.000000e+00 : f32
    %182 = vector.broadcast %cst_31 : f32 to vector<2x128xf32>
    %183 = arith.addf %182, %181 : vector<2x128xf32>
    %184 = arith.divf %182, %183 : vector<2x128xf32>
    %185 = math.tanh %179 : vector<2x128xf32>
    %186 = vector.extract_strided_slice %184 {offsets = [0, 0], sizes = [2, 32], strides = [1, 1]} : vector<2x128xf32> to vector<2x32xf32>
    %187 = vector.extract_strided_slice %184 {offsets = [0, 32], sizes = [2, 32], strides = [1, 1]} : vector<2x128xf32> to vector<2x32xf32>
    %188 = vector.extract_strided_slice %185 {offsets = [0, 64], sizes = [2, 32], strides = [1, 1]} : vector<2x128xf32> to vector<2x32xf32>
    %189 = vector.extract_strided_slice %184 {offsets = [0, 96], sizes = [2, 32], strides = [1, 1]} : vector<2x128xf32> to vector<2x32xf32>
    %190 = arith.mulf %187, %155 : vector<2x32xf32>
    %191 = arith.mulf %186, %188 : vector<2x32xf32>
    %192 = arith.addf %190, %191 : vector<2x32xf32>
    %193 = math.tanh %192 : vector<2x32xf32>
    %194 = arith.mulf %189, %193 : vector<2x32xf32>
    %195 = vector.extract_strided_slice %8 {offsets = [10, 0], sizes = [2, 128], strides = [1, 1]} : vector<16x128xf32> to vector<2x128xf32>
    %cst_32 = arith.constant dense<0.000000e+00> : vector<2x128xf32>
    %196 = tpu.matmul %175, %0, %cst_32 {dimension_numbers = #tpu.dot_dimension_numbers<[1], [0], [0], [1], [0, 0, 1, 1], [], []>} : vector<2x32xf32>, vector<32x128xf32>, vector<2x128xf32> -> vector<2x128xf32>
    %197 = arith.addf %195, %196 : vector<2x128xf32>
    %198 = arith.negf %197 : vector<2x128xf32>
    %199 = math.exp %198 : vector<2x128xf32>
    %cst_33 = arith.constant 1.000000e+00 : f32
    %200 = vector.broadcast %cst_33 : f32 to vector<2x128xf32>
    %201 = arith.addf %200, %199 : vector<2x128xf32>
    %202 = arith.divf %200, %201 : vector<2x128xf32>
    %203 = math.tanh %197 : vector<2x128xf32>
    %204 = vector.extract_strided_slice %202 {offsets = [0, 0], sizes = [2, 32], strides = [1, 1]} : vector<2x128xf32> to vector<2x32xf32>
    %205 = vector.extract_strided_slice %202 {offsets = [0, 32], sizes = [2, 32], strides = [1, 1]} : vector<2x128xf32> to vector<2x32xf32>
    %206 = vector.extract_strided_slice %203 {offsets = [0, 64], sizes = [2, 32], strides = [1, 1]} : vector<2x128xf32> to vector<2x32xf32>
    %207 = vector.extract_strided_slice %202 {offsets = [0, 96], sizes = [2, 32], strides = [1, 1]} : vector<2x128xf32> to vector<2x32xf32>
    %208 = arith.mulf %205, %173 : vector<2x32xf32>
    %209 = arith.mulf %204, %206 : vector<2x32xf32>
    %210 = arith.addf %208, %209 : vector<2x32xf32>
    %211 = math.tanh %210 : vector<2x32xf32>
    %212 = arith.mulf %207, %211 : vector<2x32xf32>
    %213 = tpu.concatenate %212, %194 in 1 : vector<2x32xf32>, vector<2x32xf32> -> vector<2x64xf32>
    %cst_34 = arith.constant dense<0.000000e+00> : vector<2x128xf32>
    %214 = tpu.matmul %213, %1, %cst_34 {dimension_numbers = #tpu.dot_dimension_numbers<[1], [0], [0], [1], [0, 0, 1, 1], [], []>} : vector<2x64xf32>, vector<64x128xf32>, vector<2x128xf32> -> vector<2x128xf32>
    %215 = vector.broadcast %2 : vector<1x128xf32> to vector<2x128xf32>
    %216 = arith.addf %214, %215 : vector<2x128xf32>
    %217 = arith.negf %216 : vector<2x128xf32>
    %218 = math.exp %217 : vector<2x128xf32>
    %cst_35 = arith.constant 1.000000e+00 : f32
    %219 = vector.broadcast %cst_35 : f32 to vector<2x128xf32>
    %220 = arith.addf %219, %218 : vector<2x128xf32>
    %221 = arith.divf %219, %220 : vector<2x128xf32>
    %222 = math.tanh %216 : vector<2x128xf32>
    %223 = vector.extract_strided_slice %221 {offsets = [0, 0], sizes = [2, 32], strides = [1, 1]} : vector<2x128xf32> to vector<2x32xf32>
    %224 = vector.extract_strided_slice %221 {offsets = [0, 32], sizes = [2, 32], strides = [1, 1]} : vector<2x128xf32> to vector<2x32xf32>
    %225 = vector.extract_strided_slice %222 {offsets = [0, 64], sizes = [2, 32], strides = [1, 1]} : vector<2x128xf32> to vector<2x32xf32>
    %226 = vector.extract_strided_slice %221 {offsets = [0, 96], sizes = [2, 32], strides = [1, 1]} : vector<2x128xf32> to vector<2x32xf32>
    %227 = arith.mulf %224, %192 : vector<2x32xf32>
    %228 = arith.mulf %223, %225 : vector<2x32xf32>
    %229 = arith.addf %227, %228 : vector<2x32xf32>
    %230 = math.tanh %229 : vector<2x32xf32>
    %231 = arith.mulf %226, %230 : vector<2x32xf32>
    %232 = vector.extract_strided_slice %8 {offsets = [12, 0], sizes = [2, 128], strides = [1, 1]} : vector<16x128xf32> to vector<2x128xf32>
    %cst_36 = arith.constant dense<0.000000e+00> : vector<2x128xf32>
    %233 = tpu.matmul %212, %0, %cst_36 {dimension_numbers = #tpu.dot_dimension_numbers<[1], [0], [0], [1], [0, 0, 1, 1], [], []>} : vector<2x32xf32>, vector<32x128xf32>, vector<2x128xf32> -> vector<2x128xf32>
    %234 = arith.addf %232, %233 : vector<2x128xf32>
    %235 = arith.negf %234 : vector<2x128xf32>
    %236 = math.exp %235 : vector<2x128xf32>
    %cst_37 = arith.constant 1.000000e+00 : f32
    %237 = vector.broadcast %cst_37 : f32 to vector<2x128xf32>
    %238 = arith.addf %237, %236 : vector<2x128xf32>
    %239 = arith.divf %237, %238 : vector<2x128xf32>
    %240 = math.tanh %234 : vector<2x128xf32>
    %241 = vector.extract_strided_slice %239 {offsets = [0, 0], sizes = [2, 32], strides = [1, 1]} : vector<2x128xf32> to vector<2x32xf32>
    %242 = vector.extract_strided_slice %239 {offsets = [0, 32], sizes = [2, 32], strides = [1, 1]} : vector<2x128xf32> to vector<2x32xf32>
    %243 = vector.extract_strided_slice %240 {offsets = [0, 64], sizes = [2, 32], strides = [1, 1]} : vector<2x128xf32> to vector<2x32xf32>
    %244 = vector.extract_strided_slice %239 {offsets = [0, 96], sizes = [2, 32], strides = [1, 1]} : vector<2x128xf32> to vector<2x32xf32>
    %245 = arith.mulf %242, %210 : vector<2x32xf32>
    %246 = arith.mulf %241, %243 : vector<2x32xf32>
    %247 = arith.addf %245, %246 : vector<2x32xf32>
    %248 = math.tanh %247 : vector<2x32xf32>
    %249 = arith.mulf %244, %248 : vector<2x32xf32>
    %250 = tpu.concatenate %249, %231 in 1 : vector<2x32xf32>, vector<2x32xf32> -> vector<2x64xf32>
    %cst_38 = arith.constant dense<0.000000e+00> : vector<2x128xf32>
    %251 = tpu.matmul %250, %1, %cst_38 {dimension_numbers = #tpu.dot_dimension_numbers<[1], [0], [0], [1], [0, 0, 1, 1], [], []>} : vector<2x64xf32>, vector<64x128xf32>, vector<2x128xf32> -> vector<2x128xf32>
    %252 = vector.broadcast %2 : vector<1x128xf32> to vector<2x128xf32>
    %253 = arith.addf %251, %252 : vector<2x128xf32>
    %254 = arith.negf %253 : vector<2x128xf32>
    %255 = math.exp %254 : vector<2x128xf32>
    %cst_39 = arith.constant 1.000000e+00 : f32
    %256 = vector.broadcast %cst_39 : f32 to vector<2x128xf32>
    %257 = arith.addf %256, %255 : vector<2x128xf32>
    %258 = arith.divf %256, %257 : vector<2x128xf32>
    %259 = math.tanh %253 : vector<2x128xf32>
    %260 = vector.extract_strided_slice %258 {offsets = [0, 0], sizes = [2, 32], strides = [1, 1]} : vector<2x128xf32> to vector<2x32xf32>
    %261 = vector.extract_strided_slice %258 {offsets = [0, 32], sizes = [2, 32], strides = [1, 1]} : vector<2x128xf32> to vector<2x32xf32>
    %262 = vector.extract_strided_slice %259 {offsets = [0, 64], sizes = [2, 32], strides = [1, 1]} : vector<2x128xf32> to vector<2x32xf32>
    %263 = vector.extract_strided_slice %258 {offsets = [0, 96], sizes = [2, 32], strides = [1, 1]} : vector<2x128xf32> to vector<2x32xf32>
    %264 = arith.mulf %261, %229 : vector<2x32xf32>
    %265 = arith.mulf %260, %262 : vector<2x32xf32>
    %266 = arith.addf %264, %265 : vector<2x32xf32>
    %267 = math.tanh %266 : vector<2x32xf32>
    %268 = arith.mulf %263, %267 : vector<2x32xf32>
    %269 = vector.extract_strided_slice %8 {offsets = [14, 0], sizes = [2, 128], strides = [1, 1]} : vector<16x128xf32> to vector<2x128xf32>
    %cst_40 = arith.constant dense<0.000000e+00> : vector<2x128xf32>
    %270 = tpu.matmul %249, %0, %cst_40 {dimension_numbers = #tpu.dot_dimension_numbers<[1], [0], [0], [1], [0, 0, 1, 1], [], []>} : vector<2x32xf32>, vector<32x128xf32>, vector<2x128xf32> -> vector<2x128xf32>
    %271 = arith.addf %269, %270 : vector<2x128xf32>
    %272 = arith.negf %271 : vector<2x128xf32>
    %273 = math.exp %272 : vector<2x128xf32>
    %cst_41 = arith.constant 1.000000e+00 : f32
    %274 = vector.broadcast %cst_41 : f32 to vector<2x128xf32>
    %275 = arith.addf %274, %273 : vector<2x128xf32>
    %276 = arith.divf %274, %275 : vector<2x128xf32>
    %277 = math.tanh %271 : vector<2x128xf32>
    %278 = vector.extract_strided_slice %276 {offsets = [0, 0], sizes = [2, 32], strides = [1, 1]} : vector<2x128xf32> to vector<2x32xf32>
    %279 = vector.extract_strided_slice %276 {offsets = [0, 32], sizes = [2, 32], strides = [1, 1]} : vector<2x128xf32> to vector<2x32xf32>
    %280 = vector.extract_strided_slice %277 {offsets = [0, 64], sizes = [2, 32], strides = [1, 1]} : vector<2x128xf32> to vector<2x32xf32>
    %281 = vector.extract_strided_slice %276 {offsets = [0, 96], sizes = [2, 32], strides = [1, 1]} : vector<2x128xf32> to vector<2x32xf32>
    %282 = arith.mulf %279, %247 : vector<2x32xf32>
    %283 = arith.mulf %278, %280 : vector<2x32xf32>
    %284 = arith.addf %282, %283 : vector<2x32xf32>
    %285 = math.tanh %284 : vector<2x32xf32>
    %286 = arith.mulf %281, %285 : vector<2x32xf32>
    %287 = tpu.concatenate %286, %268 in 1 : vector<2x32xf32>, vector<2x32xf32> -> vector<2x64xf32>
    %cst_42 = arith.constant dense<0.000000e+00> : vector<2x128xf32>
    %288 = tpu.matmul %287, %1, %cst_42 {dimension_numbers = #tpu.dot_dimension_numbers<[1], [0], [0], [1], [0, 0, 1, 1], [], []>} : vector<2x64xf32>, vector<64x128xf32>, vector<2x128xf32> -> vector<2x128xf32>
    %289 = vector.broadcast %2 : vector<1x128xf32> to vector<2x128xf32>
    %290 = arith.addf %288, %289 : vector<2x128xf32>
    %291 = arith.negf %290 : vector<2x128xf32>
    %292 = math.exp %291 : vector<2x128xf32>
    %cst_43 = arith.constant 1.000000e+00 : f32
    %293 = vector.broadcast %cst_43 : f32 to vector<2x128xf32>
    %294 = arith.addf %293, %292 : vector<2x128xf32>
    %295 = arith.divf %293, %294 : vector<2x128xf32>
    %296 = math.tanh %290 : vector<2x128xf32>
    %297 = vector.extract_strided_slice %295 {offsets = [0, 0], sizes = [2, 32], strides = [1, 1]} : vector<2x128xf32> to vector<2x32xf32>
    %298 = vector.extract_strided_slice %295 {offsets = [0, 32], sizes = [2, 32], strides = [1, 1]} : vector<2x128xf32> to vector<2x32xf32>
    %299 = vector.extract_strided_slice %296 {offsets = [0, 64], sizes = [2, 32], strides = [1, 1]} : vector<2x128xf32> to vector<2x32xf32>
    %300 = vector.extract_strided_slice %295 {offsets = [0, 96], sizes = [2, 32], strides = [1, 1]} : vector<2x128xf32> to vector<2x32xf32>
    %301 = arith.mulf %298, %266 : vector<2x32xf32>
    %302 = arith.mulf %297, %299 : vector<2x32xf32>
    %303 = arith.addf %301, %302 : vector<2x32xf32>
    %304 = math.tanh %303 : vector<2x32xf32>
    %305 = arith.mulf %300, %304 : vector<2x32xf32>
    %c0_44 = arith.constant 0 : index
    %c0_45 = arith.constant 0 : index
    %306 = vector.load %arg6[%c0_44, %c0_45] : memref<32x1xf32, #tpu.memory_space<vmem>>, vector<32x1xf32>
    %cst_46 = arith.constant dense<0.000000e+00> : vector<2x1xf32>
    %307 = tpu.matmul %305, %306, %cst_46 {dimension_numbers = #tpu.dot_dimension_numbers<[1], [0], [0], [1], [0, 0, 1, 1], [], []>} : vector<2x32xf32>, vector<32x1xf32>, vector<2x1xf32> -> vector<2x1xf32>
    %c0_47 = arith.constant 0 : index
    %c0_48 = arith.constant 0 : index
    %308 = vector.load %arg7[%c0_47, %c0_48] : memref<1x1xf32, #tpu.memory_space<vmem>>, vector<1x1xf32>
    %309 = vector.broadcast %308 : vector<1x1xf32> to vector<2x1xf32>
    %310 = arith.addf %307, %309 : vector<2x1xf32>
    %c0_49 = arith.constant 0 : index
    %c0_50 = arith.constant 0 : index
    %311 = vector.load %arg8[%c0_49, %c0_50] : memref<2x1xf32, #tpu.memory_space<vmem>>, vector<2x1xf32>
    tpu.vector_store %arg8[%c0_49, %c0_50], %310 {strides = array<i32>} : memref<2x1xf32, #tpu.memory_space<vmem>>, vector<2x1xf32>,
    return
  }
}

</mosaic_0001>

<llo_original>
// kernel: tpu_custom_call.1
$region0: #{tpu_custom_call.1}
  #allocation0 [shape = 'u32[]', space=smem, size = 0x4, offset = 0x4, fixed_abs, tag = 'smem constant byte address 0x4 - core index']
  #allocation1 [shape = 'u32[144,128]{1,0:T(1,128)}', space=vmem, size = 0x12000, scoped, tag = 'internal scratch']
  #allocation2 [shape = 'f32[1,1]{1,0:T(1,128)S(1)}', space=vmem, size = 0x200, scoped, tag = 'scoped memory for tpu_custom_call.1']
  %s0 = inlined_call_operand.vmem [shape: f32[16,4], index: 0, kind: input, shape index: {}]
  %s1 = inlined_call_operand.vmem [shape: f32[4,128], index: 1, kind: input, shape index: {}]
  %s2 = inlined_call_operand.hbm [shape: f32[32,128], index: 2, kind: input, shape index: {}]
  %s3 = inlined_call_operand.vmem [shape: f32[1,128], index: 3, kind: input, shape index: {}]
  %s4 = inlined_call_operand.vmem [shape: f32[64,128], index: 4, kind: input, shape index: {}]
  %s5 = inlined_call_operand.vmem [shape: f32[1,128], index: 5, kind: input, shape index: {}]
  %s6 = inlined_call_operand.vmem [shape: f32[32,1], index: 6, kind: input, shape index: {}]
  %s7 = inlined_call_operand.<no memory space> [shape: f32[1,1], index: 7, kind: input, shape index: {}]
  %s8 = inlined_call_operand.vmem [shape: f32[2,1], index: 8, kind: output, shape index: {}]
  %s9 = sld [smem:[#allocation0]]
  $region46: #{tpu_custom_call.1} parent=0
    _
  %s11 = ssub.s32 1, %s9
  %s12 = scalar_select 0, %s11, %s9
  %v13 = vstv %s7
  %14 = vst [vmem:[#allocation2] sm:$0x1] %v13
  $region1: #{tpu_custom_call.1} parent=0
    #allocation3 [shape = 'u8[16384]{0}', space=vmem, size = 0x4000, scoped, tag = 'input window, operand 2, single buffered']
    #allocation4 [shape = 's32[1]{0}', space=sflag, size = 0x4, scoped, tag = 'scoped memory for tpu_custom_call.1']
    %15 = vsyncpa [#allocation4], 0
    // Predicated region
    $region2: #{tpu_custom_call.1} parent=1 // pred_check
      _
    $region3: #{tpu_custom_call.1} parent=1 // pred_check_branch
      %17 = sbr.rel (0) target = $region5
    $region4: #{tpu_custom_call.1} parent=1 // pred_region
      _
    $region5: #{tpu_custom_call.1} parent=1 // pred_fallthru
      _
    // Predicated region
    $region6: #{tpu_custom_call.1} parent=1 // pred_check
      _
    $region7: #{tpu_custom_call.1} parent=1 // pred_check_branch
      %19 = sbr.rel (0) target = $region9
    $region8: #{tpu_custom_call.1} parent=1 // pred_region
      _
    $region9: #{tpu_custom_call.1} parent=1 // pred_fallthru
      _
    // Predicated region
    $region10: #{tpu_custom_call.1} parent=1 // pred_check
      _
    $region11: #{tpu_custom_call.1} parent=1 // pred_check_branch
      %21 = sbr.rel (0) target = $region13
    $region12: #{tpu_custom_call.1} parent=1 // pred_region
      %s23 = ssub.s32 512, 512
      %24 = vsyncadd [#allocation4], %s23
      %s25 = sshll.u32 [#allocation3], 4
      %s26 = int_to_ptr.vmem [resolvable:$true] %s25
      %31 = dma.hbm_to_vmem [thread:$0]  %s2, 512, %s26, [#allocation4], 128, 128, 8
    $region13: #{tpu_custom_call.1} parent=1 // pred_fallthru
      _
    // Predicated region
    $region14: #{tpu_custom_call.1} parent=1 // pred_check
      _
    $region15: #{tpu_custom_call.1} parent=1 // pred_check_branch
      %33 = sbr.rel (0) target = $region17
    $region16: #{tpu_custom_call.1} parent=1 // pred_region
      _
    $region17: #{tpu_custom_call.1} parent=1 // pred_fallthru
      _
    // Predicated region
    $region18: #{tpu_custom_call.1} parent=1 // pred_check
      _
    $region19: #{tpu_custom_call.1} parent=1 // pred_check_branch
      %35 = sbr.rel (0) target = $region21
    $region20: #{tpu_custom_call.1} parent=1 // pred_region
      _
    $region21: #{tpu_custom_call.1} parent=1 // pred_fallthru
      _
    // Predicated region
    $region22: #{tpu_custom_call.1} parent=1 // pred_check
      _
    $region23: #{tpu_custom_call.1} parent=1 // pred_check_branch
      %37 = sbr.rel (0) target = $region25
    $region24: #{tpu_custom_call.1} parent=1 // pred_region
      _
    $region25: #{tpu_custom_call.1} parent=1 // pred_fallthru
      _
    // Predicated region
    $region26: #{tpu_custom_call.1} parent=1 // pred_check
      _
    $region27: #{tpu_custom_call.1} parent=1 // pred_check_branch
      %39 = sbr.rel (0) target = $region29
    $region28: #{tpu_custom_call.1} parent=1 // pred_region
      _
    $region29: #{tpu_custom_call.1} parent=1 // pred_fallthru
      _
    // Predicated region
    $region30: #{tpu_custom_call.1} parent=1 // pred_check
      _
    $region31: #{tpu_custom_call.1} parent=1 // pred_check_branch
      %41 = sbr.rel (0) target = $region33
    $region32: #{tpu_custom_call.1} parent=1 // pred_region
      _
    $region33: #{tpu_custom_call.1} parent=1 // pred_fallthru
      _
    // Predicated region
    $region34: #{tpu_custom_call.1} parent=1 // pred_check
      _
    $region35: #{tpu_custom_call.1} parent=1 // pred_check_branch
      %43 = sbr.rel (0) target = $region37
    $region36: #{tpu_custom_call.1} parent=1 // pred_region
      %44 = dma.done [#allocation4], 512
    $region37: #{tpu_custom_call.1} parent=1 // pred_fallthru
      _
    %v45 = vld [vmem:[#allocation3] sm:$0xff]
    %v46 = vld [vmem:[#allocation3 + $0x8] sm:$0xff]
    %v47 = vld [vmem:[#allocation3 + $0x10] sm:$0xff]
    %v48 = vld [vmem:[#allocation3 + $0x18] sm:$0xff]
    %v49 = vld [vmem:[%s4] sm:$0xff]
    %v50 = vld [vmem:[%s4 + $0x8] sm:$0xff]
    %v51 = vld [vmem:[%s4 + $0x10] sm:$0xff]
    %v52 = vld [vmem:[%s4 + $0x18] sm:$0xff]
    %v53 = vld [vmem:[%s4 + $0x20] sm:$0xff]
    %v54 = vld [vmem:[%s4 + $0x28] sm:$0xff]
    %v55 = vld [vmem:[%s4 + $0x30] sm:$0xff]
    %v56 = vld [vmem:[%s4 + $0x38] sm:$0xff]
    %v57 = vld [vmem:[%s5] sm:$0x1]
    %v58 = vld [vmem:[%s0] sm:$0xff]
    %v59 = vld [vmem:[%s0 + $0x8] sm:$0xff]
    %v60 = vld [vmem:[%s1] sm:$0xf]
    %v61 = vld [vmem:[%s3] sm:$0x1]
    %v63 = vlaneseq
    %v64 = vshrl.u32 %v63, 7
    %v65 = vsub.s32 0, %v64
    %v66 = vrot.slane %v61, %v65
    %vm68 = vcmask 31744
    %v70 = vsel %vm68, %v58, 0
    %v73 = vsel %vm68, %v59, 0
    %vm75 = vcmask 1043456
    %v77 = vsel %vm75, %v60, 0
    %79 = vmatprep.subr.mxu0 0.0
    %80 = vmatpush1.msra.mxu0 %v77
    %81 = vmatprep.subr.mxu0 0.0
    %82 = vmatpush1.msra.mxu0 0.0
    %83 = vmatprep.subr.mxu0 0.0
    %84 = vmatpush1.msra.mxu0 0.0
    %85 = vmatprep.subr.mxu0 0.0
    %86 = vmatpush1.msra.mxu0 0.0
    %87 = vmatprep.subr.mxu0 0.0
    %88 = vmatpush1.msra.mxu0 0.0
    %89 = vmatprep.subr.mxu0 0.0
    %90 = vmatpush1.msra.mxu0 0.0
    %91 = vmatprep.subr.mxu0 0.0
    %92 = vmatpush1.msra.mxu0 0.0
    %93 = vmatprep.subr.mxu0 0.0
    %94 = vmatpush1.msra.mxu0 0.0
    %95 = vmatprep.subr.mxu0 0.0
    %96 = vmatpush1.msra.mxu0 0.0
    %97 = vmatprep.subr.mxu0 0.0
    %98 = vmatpush1.msra.mxu0 0.0
    %99 = vmatprep.subr.mxu0 0.0
    %100 = vmatpush1.msra.mxu0 0.0
    %101 = vmatprep.subr.mxu0 0.0
    %102 = vmatpush1.msra.mxu0 0.0
    %103 = vmatprep.subr.mxu0 0.0
    %104 = vmatpush1.msra.mxu0 0.0
    %105 = vmatprep.subr.mxu0 0.0
    %106 = vmatpush1.msra.mxu0 0.0
    %107 = vmatprep.subr.mxu0 0.0
    %108 = vmatpush1.msra.mxu0 0.0
    %109 = vmatprep.subr.mxu0 0.0
    %110 = vmatpush1.msra.mxu0 0.0
    %111 = vmatprep.subr.mxu0 0.0
    %112 = vmatpush1.msra.mxu0 0.0
    %113 = vmatprep.subr.mxu0 0.0
    %114 = vmatpush1.msra.mxu0 0.0
    %115 = vmatprep.subr.mxu0 0.0
    %116 = vmatpush1.msra.mxu0 0.0
    %117 = vmatprep.subr.mxu0 0.0
    %118 = vmatpush1.msra.mxu0 0.0
    %119 = vmatprep.subr.mxu0 0.0
    %120 = vmatpush1.msra.mxu0 0.0
    %121 = vmatprep.subr.mxu0 0.0
    %122 = vmatpush1.msra.mxu0 0.0
    %123 = vmatprep.subr.mxu0 0.0
    %124 = vmatpush1.msra.mxu0 0.0
    %125 = vmatprep.subr.mxu0 0.0
    %126 = vmatpush1.msra.mxu0 0.0
    %127 = vmatprep.subr.mxu0 0.0
    %128 = vmatpush1.msra.mxu0 0.0
    %129 = vmatprep.subr.mxu0 0.0
    %130 = vmatpush1.msra.mxu0 0.0
    %131 = vmatprep.subr.mxu0 0.0
    %132 = vmatpush1.msra.mxu0 0.0
    %133 = vmatprep.subr.mxu0 0.0
    %134 = vmatpush1.msra.mxu0 0.0
    %135 = vmatprep.subr.mxu0 0.0
    %136 = vmatpush1.msra.mxu0 0.0
    %137 = vmatprep.subr.mxu0 0.0
    %138 = vmatpush1.msra.mxu0 0.0
    %139 = vmatprep.subr.mxu0 0.0
    %140 = vmatpush1.msra.mxu0 0.0
    %141 = vmatprep.subr.mxu0 0.0
    %142 = vmatpush1.msra.mxu0 0.0
    %143 = vmatprep.mubr.f32.mxu0 0.0
    %144 = vmatmul.mubr.f32.gmra.mrb[0].mxu0 %v70
    %v145 = vpop.f32.mrb[0].mxu0
    %v146 = vadd.f32 %v66, %v145
    %v147 = vpop.f32.mrb[0].mxu0
    %148 = vmatprep.mubr.f32.mxu0 0.0
    %149 = vmatmul.mubr.f32.gmra.mrb[0].mxu0 %v73
    %v150 = vpop.f32.mrb[0].mxu0
    %v151 = vadd.f32 %v66, %v150
    %v152 = vpop.f32.mrb[0].mxu0
    %153 = vdwg.mxu0
    %vm154 = vcmask 261120
    %v156 = vsel %vm154, 0.0, 0
    %158 = vmatprep.subr.mxu0 0.0
    %159 = vmatpush1.msra.mxu0 %v45
    %160 = vmatprep.subr.mxu0 0.0
    %161 = vmatpush1.msra.mxu0 %v46
    %162 = vmatprep.subr.mxu0 0.0
    %163 = vmatpush1.msra.mxu0 %v47
    %164 = vmatprep.subr.mxu0 0.0
    %165 = vmatpush1.msra.mxu0 %v48
    %166 = vmatprep.subr.mxu0 0.0
    %167 = vmatpush1.msra.mxu0 0.0
    %168 = vmatprep.subr.mxu0 0.0
    %169 = vmatpush1.msra.mxu0 0.0
    %170 = vmatprep.subr.mxu0 0.0
    %171 = vmatpush1.msra.mxu0 0.0
    %172 = vmatprep.subr.mxu0 0.0
    %173 = vmatpush1.msra.mxu0 0.0
    %174 = vmatprep.subr.mxu0 0.0
    %175 = vmatpush1.msra.mxu0 0.0
    %176 = vmatprep.subr.mxu0 0.0
    %177 = vmatpush1.msra.mxu0 0.0
    %178 = vmatprep.subr.mxu0 0.0
    %179 = vmatpush1.msra.mxu0 0.0
    %180 = vmatprep.subr.mxu0 0.0
    %181 = vmatpush1.msra.mxu0 0.0
    %182 = vmatprep.subr.mxu0 0.0
    %183 = vmatpush1.msra.mxu0 0.0
    %184 = vmatprep.subr.mxu0 0.0
    %185 = vmatpush1.msra.mxu0 0.0
    %186 = vmatprep.subr.mxu0 0.0
    %187 = vmatpush1.msra.mxu0 0.0
    %188 = vmatprep.subr.mxu0 0.0
    %189 = vmatpush1.msra.mxu0 0.0
    %190 = vmatprep.subr.mxu0 0.0
    %191 = vmatpush1.msra.mxu0 0.0
    %192 = vmatprep.subr.mxu0 0.0
    %193 = vmatpush1.msra.mxu0 0.0
    %194 = vmatprep.subr.mxu0 0.0
    %195 = vmatpush1.msra.mxu0 0.0
    %196 = vmatprep.subr.mxu0 0.0
    %197 = vmatpush1.msra.mxu0 0.0
    %198 = vmatprep.subr.mxu0 0.0
    %199 = vmatpush1.msra.mxu0 0.0
    %200 = vmatprep.subr.mxu0 0.0
    %201 = vmatpush1.msra.mxu0 0.0
    %202 = vmatprep.subr.mxu0 0.0
    %203 = vmatpush1.msra.mxu0 0.0
    %204 = vmatprep.subr.mxu0 0.0
    %205 = vmatpush1.msra.mxu0 0.0
    %206 = vmatprep.subr.mxu0 0.0
    %207 = vmatpush1.msra.mxu0 0.0
    %208 = vmatprep.subr.mxu0 0.0
    %209 = vmatpush1.msra.mxu0 0.0
    %210 = vmatprep.subr.mxu0 0.0
    %211 = vmatpush1.msra.mxu0 0.0
    %212 = vmatprep.subr.mxu0 0.0
    %213 = vmatpush1.msra.mxu0 0.0
    %214 = vmatprep.subr.mxu0 0.0
    %215 = vmatpush1.msra.mxu0 0.0
    %216 = vmatprep.subr.mxu0 0.0
    %217 = vmatpush1.msra.mxu0 0.0
    %218 = vmatprep.subr.mxu0 0.0
    %219 = vmatpush1.msra.mxu0 0.0
    %220 = vmatprep.subr.mxu0 0.0
    %221 = vmatpush1.msra.mxu0 0.0
    %222 = vmatprep.mubr.f32.mxu0 0.0
    %223 = vmatmul.mubr.f32.gmra.mrb[0].mxu0 %v156
    %v224 = vpop.f32.mrb[0].mxu0
    %v225 = vadd.f32 0.0, %v224
    %v226 = vpop.f32.mrb[0].mxu0
    %227 = vdwg.mxu0
    %v228 = vadd.f32 %v146, %v225
    %v229 = vxor.u32 %v228, 2147483648
    %v230 = vmul.f32 %v229, 1.442695
    %v231 = vpow.pop %v230
    %v232 = vadd.f32 %v231, 1.0
    %v233 = vrcp.pop %v232
    %v234 = vmul.f32 1.0, %v233
    %v235 = vtanh.pop %v228
    %v236 = vmul.f32 %v234, 0.0
    %238 = vrot.lane.b32.xlu0 %v235, 64
    %v239 = vpop.permute.xlu0 %238
    %v241 = vmul.f32 %v234, %v239
    %243 = vrot.lane.b32.xlu0 %v241, 32
    %v244 = vpop.permute.xlu0 %243
    %v246 = vadd.f32 %v236, %v244
    %v247 = vtanh.pop %v246
    %249 = vrot.lane.b32.xlu0 %v247, 64
    %v250 = vpop.permute.xlu0 %249
    %v252 = vmul.f32 %v234, %v250
    %254 = vrot.lane.b32.xlu0 %v252, 32
    %v255 = vpop.permute.xlu0 %254
    %v257 = vsel %vm154, %v255, 0.0
    %v259 = vlaneseq
    %v260 = vshrl.u32 %v259, 7
    %v261 = vsub.s32 0, %v260
    %v262 = vrot.slane %v57, %v261
    %vm264 = vcmask 523264
    %v266 = vsel %vm264, %v257, 0
    %268 = vmatprep.subr.mxu0 0.0
    %269 = vmatpush1.msra.mxu0 %v49
    %270 = vmatprep.subr.mxu0 0.0
    %271 = vmatpush1.msra.mxu0 %v50
    %272 = vmatprep.subr.mxu0 0.0
    %273 = vmatpush1.msra.mxu0 %v51
    %274 = vmatprep.subr.mxu0 0.0
    %275 = vmatpush1.msra.mxu0 %v52
    %276 = vmatprep.subr.mxu0 0.0
    %277 = vmatpush1.msra.mxu0 %v53
    %278 = vmatprep.subr.mxu0 0.0
    %279 = vmatpush1.msra.mxu0 %v54
    %280 = vmatprep.subr.mxu0 0.0
    %281 = vmatpush1.msra.mxu0 %v55
    %282 = vmatprep.subr.mxu0 0.0
    %283 = vmatpush1.msra.mxu0 %v56
    %284 = vmatprep.subr.mxu0 0.0
    %285 = vmatpush1.msra.mxu0 0.0
    %286 = vmatprep.subr.mxu0 0.0
    %287 = vmatpush1.msra.mxu0 0.0
    %288 = vmatprep.subr.mxu0 0.0
    %289 = vmatpush1.msra.mxu0 0.0
    %290 = vmatprep.subr.mxu0 0.0
    %291 = vmatpush1.msra.mxu0 0.0
    %292 = vmatprep.subr.mxu0 0.0
    %293 = vmatpush1.msra.mxu0 0.0
    %294 = vmatprep.subr.mxu0 0.0
    %295 = vmatpush1.msra.mxu0 0.0
    %296 = vmatprep.subr.mxu0 0.0
    %297 = vmatpush1.msra.mxu0 0.0
    %298 = vmatprep.subr.mxu0 0.0
    %299 = vmatpush1.msra.mxu0 0.0
    %300 = vmatprep.subr.mxu0 0.0
    %301 = vmatpush1.msra.mxu0 0.0
    %302 = vmatprep.subr.mxu0 0.0
    %303 = vmatpush1.msra.mxu0 0.0
    %304 = vmatprep.subr.mxu0 0.0
    %305 = vmatpush1.msra.mxu0 0.0
    %306 = vmatprep.subr.mxu0 0.0
    %307 = vmatpush1.msra.mxu0 0.0
    %308 = vmatprep.subr.mxu0 0.0
    %309 = vmatpush1.msra.mxu0 0.0
    %310 = vmatprep.subr.mxu0 0.0
    %311 = vmatpush1.msra.mxu0 0.0
    %312 = vmatprep.subr.mxu0 0.0
    %313 = vmatpush1.msra.mxu0 0.0
    %314 = vmatprep.subr.mxu0 0.0
    %315 = vmatpush1.msra.mxu0 0.0
    %316 = vmatprep.subr.mxu0 0.0
    %317 = vmatpush1.msra.mxu0 0.0
    %318 = vmatprep.subr.mxu0 0.0
    %319 = vmatpush1.msra.mxu0 0.0
    %320 = vmatprep.subr.mxu0 0.0
    %321 = vmatpush1.msra.mxu0 0.0
    %322 = vmatprep.subr.mxu0 0.0
    %323 = vmatpush1.msra.mxu0 0.0
    %324 = vmatprep.subr.mxu0 0.0
    %325 = vmatpush1.msra.mxu0 0.0
    %326 = vmatprep.subr.mxu0 0.0
    %327 = vmatpush1.msra.mxu0 0.0
    %328 = vmatprep.subr.mxu0 0.0
    %329 = vmatpush1.msra.mxu0 0.0
    %330 = vmatprep.subr.mxu0 0.0
    %331 = vmatpush1.msra.mxu0 0.0
    %332 = vmatprep.mubr.f32.mxu0 0.0
    %333 = vmatmul.mubr.f32.gmra.mrb[0].mxu0 %v266
    %v334 = vpop.f32.mrb[0].mxu0
    %v335 = vadd.f32 %v262, %v334
    %v336 = vpop.f32.mrb[0].mxu0
    %337 = vdwg.mxu0
    %v338 = vxor.u32 %v335, 2147483648
    %v339 = vmul.f32 %v338, 1.442695
    %v340 = vpow.pop %v339
    %v341 = vadd.f32 %v340, 1.0
    %v342 = vrcp.pop %v341
    %v343 = vmul.f32 1.0, %v342
    %v344 = vtanh.pop %v335
    %v345 = vmul.f32 %v343, 0.0
    %347 = vrot.lane.b32.xlu0 %v344, 64
    %v348 = vpop.permute.xlu0 %347
    %v350 = vmul.f32 %v343, %v348
    %352 = vrot.lane.b32.xlu0 %v350, 32
    %v353 = vpop.permute.xlu0 %352
    %v355 = vadd.f32 %v345, %v353
    %v356 = vtanh.pop %v355
    %358 = vrot.lane.b32.xlu0 %v356, 64
    %v359 = vpop.permute.xlu0 %358
    %v361 = vmul.f32 %v343, %v359
    %v362 = vsel %vm154, %v255, 0
    %364 = vmatprep.subr.mxu0 0.0
    %365 = vmatpush1.msra.mxu0 %v45
    %366 = vmatprep.subr.mxu0 0.0
    %367 = vmatpush1.msra.mxu0 %v46
    %368 = vmatprep.subr.mxu0 0.0
    %369 = vmatpush1.msra.mxu0 %v47
    %370 = vmatprep.subr.mxu0 0.0
    %371 = vmatpush1.msra.mxu0 %v48
    %372 = vmatprep.subr.mxu0 0.0
    %373 = vmatpush1.msra.mxu0 0.0
    %374 = vmatprep.subr.mxu0 0.0
    %375 = vmatpush1.msra.mxu0 0.0
    %376 = vmatprep.subr.mxu0 0.0
    %377 = vmatpush1.msra.mxu0 0.0
    %378 = vmatprep.subr.mxu0 0.0
    %379 = vmatpush1.msra.mxu0 0.0
    %380 = vmatprep.subr.mxu0 0.0
    %381 = vmatpush1.msra.mxu0 0.0
    %382 = vmatprep.subr.mxu0 0.0
    %383 = vmatpush1.msra.mxu0 0.0
    %384 = vmatprep.subr.mxu0 0.0
    %385 = vmatpush1.msra.mxu0 0.0
    %386 = vmatprep.subr.mxu0 0.0
    %387 = vmatpush1.msra.mxu0 0.0
    %388 = vmatprep.subr.mxu0 0.0
    %389 = vmatpush1.msra.mxu0 0.0
    %390 = vmatprep.subr.mxu0 0.0
    %391 = vmatpush1.msra.mxu0 0.0
    %392 = vmatprep.subr.mxu0 0.0
    %393 = vmatpush1.msra.mxu0 0.0
    %394 = vmatprep.subr.mxu0 0.0
    %395 = vmatpush1.msra.mxu0 0.0
    %396 = vmatprep.subr.mxu0 0.0
    %397 = vmatpush1.msra.mxu0 0.0
    %398 = vmatprep.subr.mxu0 0.0
    %399 = vmatpush1.msra.mxu0 0.0
    %400 = vmatprep.subr.mxu0 0.0
    %401 = vmatpush1.msra.mxu0 0.0
    %402 = vmatprep.subr.mxu0 0.0
    %403 = vmatpush1.msra.mxu0 0.0
    %404 = vmatprep.subr.mxu0 0.0
    %405 = vmatpush1.msra.mxu0 0.0
    %406 = vmatprep.subr.mxu0 0.0
    %407 = vmatpush1.msra.mxu0 0.0
    %408 = vmatprep.subr.mxu0 0.0
    %409 = vmatpush1.msra.mxu0 0.0
    %410 = vmatprep.subr.mxu0 0.0
    %411 = vmatpush1.msra.mxu0 0.0
    %412 = vmatprep.subr.mxu0 0.0
    %413 = vmatpush1.msra.mxu0 0.0
    %414 = vmatprep.subr.mxu0 0.0
    %415 = vmatpush1.msra.mxu0 0.0
    %416 = vmatprep.subr.mxu0 0.0
    %417 = vmatpush1.msra.mxu0 0.0
    %418 = vmatprep.subr.mxu0 0.0
    %419 = vmatpush1.msra.mxu0 0.0
    %420 = vmatprep.subr.mxu0 0.0
    %421 = vmatpush1.msra.mxu0 0.0
    %422 = vmatprep.subr.mxu0 0.0
    %423 = vmatpush1.msra.mxu0 0.0
    %424 = vmatprep.subr.mxu0 0.0
    %425 = vmatpush1.msra.mxu0 0.0
    %426 = vmatprep.subr.mxu0 0.0
    %427 = vmatpush1.msra.mxu0 0.0
    %428 = vmatprep.mubr.f32.mxu0 0.0
    %429 = vmatmul.mubr.f32.gmra.mrb[0].mxu0 %v362
    %v430 = vpop.f32.mrb[0].mxu0
    %v431 = vadd.f32 0.0, %v430
    %v432 = vpop.f32.mrb[0].mxu0
    %433 = vdwg.mxu0
    %v435 = vrot.slane %v431, 6
    %v437 = vadd.f32 %v146, %v435
    %v438 = vxor.u32 %v437, 2147483648
    %v439 = vmul.f32 %v438, 1.442695
    %v440 = vpow.pop %v439
    %v441 = vadd.f32 %v440, 1.0
    %v442 = vrcp.pop %v441
    %v443 = vmul.f32 1.0, %v442
    %v444 = vtanh.pop %v437
    %v446 = vrot.slane %v246, 6
    %v448 = vmul.f32 %v443, %v446
    %450 = vrot.lane.b32.xlu0 %v444, 64
    %v451 = vpop.permute.xlu0 %450
    %v453 = vmul.f32 %v443, %v451
    %455 = vrot.lane.b32.xlu0 %v453, 32
    %v456 = vpop.permute.xlu0 %455
    %v458 = vadd.f32 %v448, %v456
    %v459 = vtanh.pop %v458
    %461 = vrot.lane.b32.xlu0 %v459, 64
    %v462 = vpop.permute.xlu0 %461
    %v464 = vmul.f32 %v443, %v462
    %466 = vrot.lane.b32.xlu0 %v464, 32
    %v467 = vpop.permute.xlu0 %466
    %v470 = vrot.slane %v361, 6
    %471 = vrot.lane.b32.xlu0 %v470, 64
    %v472 = vpop.permute.xlu0 %471
    %v474 = vsel %vm154, %v467, %v472
    %v476 = vrot.slane %v474, 2
    %v477 = vsel %vm264, %v476, 0
    %479 = vmatprep.subr.mxu0 0.0
    %480 = vmatpush1.msra.mxu0 %v49
    %481 = vmatprep.subr.mxu0 0.0
    %482 = vmatpush1.msra.mxu0 %v50
    %483 = vmatprep.subr.mxu0 0.0
    %484 = vmatpush1.msra.mxu0 %v51
    %485 = vmatprep.subr.mxu0 0.0
    %486 = vmatpush1.msra.mxu0 %v52
    %487 = vmatprep.subr.mxu0 0.0
    %488 = vmatpush1.msra.mxu0 %v53
    %489 = vmatprep.subr.mxu0 0.0
    %490 = vmatpush1.msra.mxu0 %v54
    %491 = vmatprep.subr.mxu0 0.0
    %492 = vmatpush1.msra.mxu0 %v55
    %493 = vmatprep.subr.mxu0 0.0
    %494 = vmatpush1.msra.mxu0 %v56
    %495 = vmatprep.subr.mxu0 0.0
    %496 = vmatpush1.msra.mxu0 0.0
    %497 = vmatprep.subr.mxu0 0.0
    %498 = vmatpush1.msra.mxu0 0.0
    %499 = vmatprep.subr.mxu0 0.0
    %500 = vmatpush1.msra.mxu0 0.0
    %501 = vmatprep.subr.mxu0 0.0
    %502 = vmatpush1.msra.mxu0 0.0
    %503 = vmatprep.subr.mxu0 0.0
    %504 = vmatpush1.msra.mxu0 0.0
    %505 = vmatprep.subr.mxu0 0.0
    %506 = vmatpush1.msra.mxu0 0.0
    %507 = vmatprep.subr.mxu0 0.0
    %508 = vmatpush1.msra.mxu0 0.0
    %509 = vmatprep.subr.mxu0 0.0
    %510 = vmatpush1.msra.mxu0 0.0
    %511 = vmatprep.subr.mxu0 0.0
    %512 = vmatpush1.msra.mxu0 0.0
    %513 = vmatprep.subr.mxu0 0.0
    %514 = vmatpush1.msra.mxu0 0.0
    %515 = vmatprep.subr.mxu0 0.0
    %516 = vmatpush1.msra.mxu0 0.0
    %517 = vmatprep.subr.mxu0 0.0
    %518 = vmatpush1.msra.mxu0 0.0
    %519 = vmatprep.subr.mxu0 0.0
    %520 = vmatpush1.msra.mxu0 0.0
    %521 = vmatprep.subr.mxu0 0.0
    %522 = vmatpush1.msra.mxu0 0.0
    %523 = vmatprep.subr.mxu0 0.0
    %524 = vmatpush1.msra.mxu0 0.0
    %525 = vmatprep.subr.mxu0 0.0
    %526 = vmatpush1.msra.mxu0 0.0
    %527 = vmatprep.subr.mxu0 0.0
    %528 = vmatpush1.msra.mxu0 0.0
    %529 = vmatprep.subr.mxu0 0.0
    %530 = vmatpush1.msra.mxu0 0.0
    %531 = vmatprep.subr.mxu0 0.0
    %532 = vmatpush1.msra.mxu0 0.0
    %533 = vmatprep.subr.mxu0 0.0
    %534 = vmatpush1.msra.mxu0 0.0
    %535 = vmatprep.subr.mxu0 0.0
    %536 = vmatpush1.msra.mxu0 0.0
    %537 = vmatprep.subr.mxu0 0.0
    %538 = vmatpush1.msra.mxu0 0.0
    %539 = vmatprep.subr.mxu0 0.0
    %540 = vmatpush1.msra.mxu0 0.0
    %541 = vmatprep.subr.mxu0 0.0
    %542 = vmatpush1.msra.mxu0 0.0
    %543 = vmatprep.mubr.f32.mxu0 0.0
    %544 = vmatmul.mubr.f32.gmra.mrb[0].mxu0 %v477
    %v545 = vpop.f32.mrb[0].mxu0
    %v546 = vadd.f32 %v262, %v545
    %v547 = vpop.f32.mrb[0].mxu0
    %548 = vdwg.mxu0
    %v549 = vxor.u32 %v546, 2147483648
    %v550 = vmul.f32 %v549, 1.442695
    %v551 = vpow.pop %v550
    %v552 = vadd.f32 %v551, 1.0
    %v553 = vrcp.pop %v552
    %v554 = vmul.f32 1.0, %v553
    %v555 = vtanh.pop %v546
    %v556 = vmul.f32 %v554, %v355
    %558 = vrot.lane.b32.xlu0 %v555, 64
    %v559 = vpop.permute.xlu0 %558
    %v561 = vmul.f32 %v554, %v559
    %563 = vrot.lane.b32.xlu0 %v561, 32
    %v564 = vpop.permute.xlu0 %563
    %v566 = vadd.f32 %v556, %v564
    %v567 = vtanh.pop %v566
    %569 = vrot.lane.b32.xlu0 %v567, 64
    %v570 = vpop.permute.xlu0 %569
    %v572 = vmul.f32 %v554, %v570
    %v573 = vrot.slane %v464, 2
    %574 = vrot.lane.b32.xlu0 %v573, 32
    %v575 = vpop.permute.xlu0 %574
    %v576 = vsel %vm154, %v575, 0
    %578 = vmatprep.subr.mxu0 0.0
    %579 = vmatpush1.msra.mxu0 %v45
    %580 = vmatprep.subr.mxu0 0.0
    %581 = vmatpush1.msra.mxu0 %v46
    %582 = vmatprep.subr.mxu0 0.0
    %583 = vmatpush1.msra.mxu0 %v47
    %584 = vmatprep.subr.mxu0 0.0
    %585 = vmatpush1.msra.mxu0 %v48
    %586 = vmatprep.subr.mxu0 0.0
    %587 = vmatpush1.msra.mxu0 0.0
    %588 = vmatprep.subr.mxu0 0.0
    %589 = vmatpush1.msra.mxu0 0.0
    %590 = vmatprep.subr.mxu0 0.0
    %591 = vmatpush1.msra.mxu0 0.0
    %592 = vmatprep.subr.mxu0 0.0
    %593 = vmatpush1.msra.mxu0 0.0
    %594 = vmatprep.subr.mxu0 0.0
    %595 = vmatpush1.msra.mxu0 0.0
    %596 = vmatprep.subr.mxu0 0.0
    %597 = vmatpush1.msra.mxu0 0.0
    %598 = vmatprep.subr.mxu0 0.0
    %599 = vmatpush1.msra.mxu0 0.0
    %600 = vmatprep.subr.mxu0 0.0
    %601 = vmatpush1.msra.mxu0 0.0
    %602 = vmatprep.subr.mxu0 0.0
    %603 = vmatpush1.msra.mxu0 0.0
    %604 = vmatprep.subr.mxu0 0.0
    %605 = vmatpush1.msra.mxu0 0.0
    %606 = vmatprep.subr.mxu0 0.0
    %607 = vmatpush1.msra.mxu0 0.0
    %608 = vmatprep.subr.mxu0 0.0
    %609 = vmatpush1.msra.mxu0 0.0
    %610 = vmatprep.subr.mxu0 0.0
    %611 = vmatpush1.msra.mxu0 0.0
    %612 = vmatprep.subr.mxu0 0.0
    %613 = vmatpush1.msra.mxu0 0.0
    %614 = vmatprep.subr.mxu0 0.0
    %615 = vmatpush1.msra.mxu0 0.0
    %616 = vmatprep.subr.mxu0 0.0
    %617 = vmatpush1.msra.mxu0 0.0
    %618 = vmatprep.subr.mxu0 0.0
    %619 = vmatpush1.msra.mxu0 0.0
    %620 = vmatprep.subr.mxu0 0.0
    %621 = vmatpush1.msra.mxu0 0.0
    %622 = vmatprep.subr.mxu0 0.0
    %623 = vmatpush1.msra.mxu0 0.0
    %624 = vmatprep.subr.mxu0 0.0
    %625 = vmatpush1.msra.mxu0 0.0
    %626 = vmatprep.subr.mxu0 0.0
    %627 = vmatpush1.msra.mxu0 0.0
    %628 = vmatprep.subr.mxu0 0.0
    %629 = vmatpush1.msra.mxu0 0.0
    %630 = vmatprep.subr.mxu0 0.0
    %631 = vmatpush1.msra.mxu0 0.0
    %632 = vmatprep.subr.mxu0 0.0
    %633 = vmatpush1.msra.mxu0 0.0
    %634 = vmatprep.subr.mxu0 0.0
    %635 = vmatpush1.msra.mxu0 0.0
    %636 = vmatprep.subr.mxu0 0.0
    %637 = vmatpush1.msra.mxu0 0.0
    %638 = vmatprep.subr.mxu0 0.0
    %639 = vmatpush1.msra.mxu0 0.0
    %640 = vmatprep.subr.mxu0 0.0
    %641 = vmatpush1.msra.mxu0 0.0
    %642 = vmatprep.mubr.f32.mxu0 0.0
    %643 = vmatmul.mubr.f32.gmra.mrb[0].mxu0 %v576
    %v644 = vpop.f32.mrb[0].mxu0
    %v645 = vadd.f32 0.0, %v644
    %v646 = vpop.f32.mrb[0].mxu0
    %647 = vdwg.mxu0
    %v649 = vrot.slane %v645, 4
    %v651 = vadd.f32 %v146, %v649
    %v652 = vxor.u32 %v651, 2147483648
    %v653 = vmul.f32 %v652, 1.442695
    %v654 = vpow.pop %v653
    %v655 = vadd.f32 %v654, 1.0
    %v656 = vrcp.pop %v655
    %v657 = vmul.f32 1.0, %v656
    %v658 = vtanh.pop %v651
    %v660 = vrot.slane %v458, 6
    %v662 = vmul.f32 %v657, %v660
    %664 = vrot.lane.b32.xlu0 %v658, 64
    %v665 = vpop.permute.xlu0 %664
    %v667 = vmul.f32 %v657, %v665
    %669 = vrot.lane.b32.xlu0 %v667, 32
    %v670 = vpop.permute.xlu0 %669
    %v672 = vadd.f32 %v662, %v670
    %v673 = vtanh.pop %v672
    %675 = vrot.lane.b32.xlu0 %v673, 64
    %v676 = vpop.permute.xlu0 %675
    %v678 = vmul.f32 %v657, %v676
    %680 = vrot.lane.b32.xlu0 %v678, 32
    %v681 = vpop.permute.xlu0 %680
    %v684 = vrot.slane %v572, 4
    %685 = vrot.lane.b32.xlu0 %v684, 64
    %v686 = vpop.permute.xlu0 %685
    %v688 = vsel %vm154, %v681, %v686
    %v690 = vrot.slane %v688, 4
    %v691 = vsel %vm264, %v690, 0
    %693 = vmatprep.subr.mxu0 0.0
    %694 = vmatpush1.msra.mxu0 %v49
    %695 = vmatprep.subr.mxu0 0.0
    %696 = vmatpush1.msra.mxu0 %v50
    %697 = vmatprep.subr.mxu0 0.0
    %698 = vmatpush1.msra.mxu0 %v51
    %699 = vmatprep.subr.mxu0 0.0
    %700 = vmatpush1.msra.mxu0 %v52
    %701 = vmatprep.subr.mxu0 0.0
    %702 = vmatpush1.msra.mxu0 %v53
    %703 = vmatprep.subr.mxu0 0.0
    %704 = vmatpush1.msra.mxu0 %v54
    %705 = vmatprep.subr.mxu0 0.0
    %706 = vmatpush1.msra.mxu0 %v55
    %707 = vmatprep.subr.mxu0 0.0
    %708 = vmatpush1.msra.mxu0 %v56
    %709 = vmatprep.subr.mxu0 0.0
    %710 = vmatpush1.msra.mxu0 0.0
    %711 = vmatprep.subr.mxu0 0.0
    %712 = vmatpush1.msra.mxu0 0.0
    %713 = vmatprep.subr.mxu0 0.0
    %714 = vmatpush1.msra.mxu0 0.0
    %715 = vmatprep.subr.mxu0 0.0
    %716 = vmatpush1.msra.mxu0 0.0
    %717 = vmatprep.subr.mxu0 0.0
    %718 = vmatpush1.msra.mxu0 0.0
    %719 = vmatprep.subr.mxu0 0.0
    %720 = vmatpush1.msra.mxu0 0.0
    %721 = vmatprep.subr.mxu0 0.0
    %722 = vmatpush1.msra.mxu0 0.0
    %723 = vmatprep.subr.mxu0 0.0
    %724 = vmatpush1.msra.mxu0 0.0
    %725 = vmatprep.subr.mxu0 0.0
    %726 = vmatpush1.msra.mxu0 0.0
    %727 = vmatprep.subr.mxu0 0.0
    %728 = vmatpush1.msra.mxu0 0.0
    %729 = vmatprep.subr.mxu0 0.0
    %730 = vmatpush1.msra.mxu0 0.0
    %731 = vmatprep.subr.mxu0 0.0
    %732 = vmatpush1.msra.mxu0 0.0
    %733 = vmatprep.subr.mxu0 0.0
    %734 = vmatpush1.msra.mxu0 0.0
    %735 = vmatprep.subr.mxu0 0.0
    %736 = vmatpush1.msra.mxu0 0.0
    %737 = vmatprep.subr.mxu0 0.0
    %738 = vmatpush1.msra.mxu0 0.0
    %739 = vmatprep.subr.mxu0 0.0
    %740 = vmatpush1.msra.mxu0 0.0
    %741 = vmatprep.subr.mxu0 0.0
    %742 = vmatpush1.msra.mxu0 0.0
    %743 = vmatprep.subr.mxu0 0.0
    %744 = vmatpush1.msra.mxu0 0.0
    %745 = vmatprep.subr.mxu0 0.0
    %746 = vmatpush1.msra.mxu0 0.0
    %747 = vmatprep.subr.mxu0 0.0
    %748 = vmatpush1.msra.mxu0 0.0
    %749 = vmatprep.subr.mxu0 0.0
    %750 = vmatpush1.msra.mxu0 0.0
    %751 = vmatprep.subr.mxu0 0.0
    %752 = vmatpush1.msra.mxu0 0.0
    %753 = vmatprep.subr.mxu0 0.0
    %754 = vmatpush1.msra.mxu0 0.0
    %755 = vmatprep.subr.mxu0 0.0
    %756 = vmatpush1.msra.mxu0 0.0
    %757 = vmatprep.mubr.f32.mxu0 0.0
    %758 = vmatmul.mubr.f32.gmra.mrb[0].mxu0 %v691
    %v759 = vpop.f32.mrb[0].mxu0
    %v760 = vadd.f32 %v262, %v759
    %v761 = vpop.f32.mrb[0].mxu0
    %762 = vdwg.mxu0
    %v763 = vxor.u32 %v760, 2147483648
    %v764 = vmul.f32 %v763, 1.442695
    %v765 = vpow.pop %v764
    %v766 = vadd.f32 %v765, 1.0
    %v767 = vrcp.pop %v766
    %v768 = vmul.f32 1.0, %v767
    %v769 = vtanh.pop %v760
    %v770 = vmul.f32 %v768, %v566
    %772 = vrot.lane.b32.xlu0 %v769, 64
    %v773 = vpop.permute.xlu0 %772
    %v775 = vmul.f32 %v768, %v773
    %777 = vrot.lane.b32.xlu0 %v775, 32
    %v778 = vpop.permute.xlu0 %777
    %v780 = vadd.f32 %v770, %v778
    %v781 = vtanh.pop %v780
    %783 = vrot.lane.b32.xlu0 %v781, 64
    %v784 = vpop.permute.xlu0 %783
    %v786 = vmul.f32 %v768, %v784
    %v787 = vrot.slane %v678, 4
    %788 = vrot.lane.b32.xlu0 %v787, 32
    %v789 = vpop.permute.xlu0 %788
    %v790 = vsel %vm154, %v789, 0
    %792 = vmatprep.subr.mxu0 0.0
    %793 = vmatpush1.msra.mxu0 %v45
    %794 = vmatprep.subr.mxu0 0.0
    %795 = vmatpush1.msra.mxu0 %v46
    %796 = vmatprep.subr.mxu0 0.0
    %797 = vmatpush1.msra.mxu0 %v47
    %798 = vmatprep.subr.mxu0 0.0
    %799 = vmatpush1.msra.mxu0 %v48
    %800 = vmatprep.subr.mxu0 0.0
    %801 = vmatpush1.msra.mxu0 0.0
    %802 = vmatprep.subr.mxu0 0.0
    %803 = vmatpush1.msra.mxu0 0.0
    %804 = vmatprep.subr.mxu0 0.0
    %805 = vmatpush1.msra.mxu0 0.0
    %806 = vmatprep.subr.mxu0 0.0
    %807 = vmatpush1.msra.mxu0 0.0
    %808 = vmatprep.subr.mxu0 0.0
    %809 = vmatpush1.msra.mxu0 0.0
    %810 = vmatprep.subr.mxu0 0.0
    %811 = vmatpush1.msra.mxu0 0.0
    %812 = vmatprep.subr.mxu0 0.0
    %813 = vmatpush1.msra.mxu0 0.0
    %814 = vmatprep.subr.mxu0 0.0
    %815 = vmatpush1.msra.mxu0 0.0
    %816 = vmatprep.subr.mxu0 0.0
    %817 = vmatpush1.msra.mxu0 0.0
    %818 = vmatprep.subr.mxu0 0.0
    %819 = vmatpush1.msra.mxu0 0.0
    %820 = vmatprep.subr.mxu0 0.0
    %821 = vmatpush1.msra.mxu0 0.0
    %822 = vmatprep.subr.mxu0 0.0
    %823 = vmatpush1.msra.mxu0 0.0
    %824 = vmatprep.subr.mxu0 0.0
    %825 = vmatpush1.msra.mxu0 0.0
    %826 = vmatprep.subr.mxu0 0.0
    %827 = vmatpush1.msra.mxu0 0.0
    %828 = vmatprep.subr.mxu0 0.0
    %829 = vmatpush1.msra.mxu0 0.0
    %830 = vmatprep.subr.mxu0 0.0
    %831 = vmatpush1.msra.mxu0 0.0
    %832 = vmatprep.subr.mxu0 0.0
    %833 = vmatpush1.msra.mxu0 0.0
    %834 = vmatprep.subr.mxu0 0.0
    %835 = vmatpush1.msra.mxu0 0.0
    %836 = vmatprep.subr.mxu0 0.0
    %837 = vmatpush1.msra.mxu0 0.0
    %838 = vmatprep.subr.mxu0 0.0
    %839 = vmatpush1.msra.mxu0 0.0
    %840 = vmatprep.subr.mxu0 0.0
    %841 = vmatpush1.msra.mxu0 0.0
    %842 = vmatprep.subr.mxu0 0.0
    %843 = vmatpush1.msra.mxu0 0.0
    %844 = vmatprep.subr.mxu0 0.0
    %845 = vmatpush1.msra.mxu0 0.0
    %846 = vmatprep.subr.mxu0 0.0
    %847 = vmatpush1.msra.mxu0 0.0
    %848 = vmatprep.subr.mxu0 0.0
    %849 = vmatpush1.msra.mxu0 0.0
    %850 = vmatprep.subr.mxu0 0.0
    %851 = vmatpush1.msra.mxu0 0.0
    %852 = vmatprep.subr.mxu0 0.0
    %853 = vmatpush1.msra.mxu0 0.0
    %854 = vmatprep.subr.mxu0 0.0
    %855 = vmatpush1.msra.mxu0 0.0
    %856 = vmatprep.mubr.f32.mxu0 0.0
    %857 = vmatmul.mubr.f32.gmra.mrb[0].mxu0 %v790
    %v858 = vpop.f32.mrb[0].mxu0
    %v859 = vadd.f32 0.0, %v858
    %v860 = vpop.f32.mrb[0].mxu0
    %861 = vdwg.mxu0
    %v863 = vrot.slane %v859, 2
    %v865 = vadd.f32 %v146, %v863
    %v866 = vxor.u32 %v865, 2147483648
    %v867 = vmul.f32 %v866, 1.442695
    %v868 = vpow.pop %v867
    %v869 = vadd.f32 %v868, 1.0
    %v870 = vrcp.pop %v869
    %v871 = vmul.f32 1.0, %v870
    %v872 = vtanh.pop %v865
    %v874 = vrot.slane %v672, 6
    %v876 = vmul.f32 %v871, %v874
    %878 = vrot.lane.b32.xlu0 %v872, 64
    %v879 = vpop.permute.xlu0 %878
    %v881 = vmul.f32 %v871, %v879
    %883 = vrot.lane.b32.xlu0 %v881, 32
    %v884 = vpop.permute.xlu0 %883
    %v886 = vadd.f32 %v876, %v884
    %v887 = vtanh.pop %v886
    %889 = vrot.lane.b32.xlu0 %v887, 64
    %v890 = vpop.permute.xlu0 %889
    %v892 = vmul.f32 %v871, %v890
    %894 = vrot.lane.b32.xlu0 %v892, 32
    %v895 = vpop.permute.xlu0 %894
    %v898 = vrot.slane %v786, 2
    %899 = vrot.lane.b32.xlu0 %v898, 64
    %v900 = vpop.permute.xlu0 %899
    %v902 = vsel %vm154, %v895, %v900
    %v904 = vrot.slane %v902, 6
    %v905 = vsel %vm264, %v904, 0
    %907 = vmatprep.subr.mxu0 0.0
    %908 = vmatpush1.msra.mxu0 %v49
    %909 = vmatprep.subr.mxu0 0.0
    %910 = vmatpush1.msra.mxu0 %v50
    %911 = vmatprep.subr.mxu0 0.0
    %912 = vmatpush1.msra.mxu0 %v51
    %913 = vmatprep.subr.mxu0 0.0
    %914 = vmatpush1.msra.mxu0 %v52
    %915 = vmatprep.subr.mxu0 0.0
    %916 = vmatpush1.msra.mxu0 %v53
    %917 = vmatprep.subr.mxu0 0.0
    %918 = vmatpush1.msra.mxu0 %v54
    %919 = vmatprep.subr.mxu0 0.0
    %920 = vmatpush1.msra.mxu0 %v55
    %921 = vmatprep.subr.mxu0 0.0
    %922 = vmatpush1.msra.mxu0 %v56
    %923 = vmatprep.subr.mxu0 0.0
    %924 = vmatpush1.msra.mxu0 0.0
    %925 = vmatprep.subr.mxu0 0.0
    %926 = vmatpush1.msra.mxu0 0.0
    %927 = vmatprep.subr.mxu0 0.0
    %928 = vmatpush1.msra.mxu0 0.0
    %929 = vmatprep.subr.mxu0 0.0
    %930 = vmatpush1.msra.mxu0 0.0
    %931 = vmatprep.subr.mxu0 0.0
    %932 = vmatpush1.msra.mxu0 0.0
    %933 = vmatprep.subr.mxu0 0.0
    %934 = vmatpush1.msra.mxu0 0.0
    %935 = vmatprep.subr.mxu0 0.0
    %936 = vmatpush1.msra.mxu0 0.0
    %937 = vmatprep.subr.mxu0 0.0
    %938 = vmatpush1.msra.mxu0 0.0
    %939 = vmatprep.subr.mxu0 0.0
    %940 = vmatpush1.msra.mxu0 0.0
    %941 = vmatprep.subr.mxu0 0.0
    %942 = vmatpush1.msra.mxu0 0.0
    %943 = vmatprep.subr.mxu0 0.0
    %944 = vmatpush1.msra.mxu0 0.0
    %945 = vmatprep.subr.mxu0 0.0
    %946 = vmatpush1.msra.mxu0 0.0
    %947 = vmatprep.subr.mxu0 0.0
    %948 = vmatpush1.msra.mxu0 0.0
    %949 = vmatprep.subr.mxu0 0.0
    %950 = vmatpush1.msra.mxu0 0.0
    %951 = vmatprep.subr.mxu0 0.0
    %952 = vmatpush1.msra.mxu0 0.0
    %953 = vmatprep.subr.mxu0 0.0
    %954 = vmatpush1.msra.mxu0 0.0
    %955 = vmatprep.subr.mxu0 0.0
    %956 = vmatpush1.msra.mxu0 0.0
    %957 = vmatprep.subr.mxu0 0.0
    %958 = vmatpush1.msra.mxu0 0.0
    %959 = vmatprep.subr.mxu0 0.0
    %960 = vmatpush1.msra.mxu0 0.0
    %961 = vmatprep.subr.mxu0 0.0
    %962 = vmatpush1.msra.mxu0 0.0
    %963 = vmatprep.subr.mxu0 0.0
    %964 = vmatpush1.msra.mxu0 0.0
    %965 = vmatprep.subr.mxu0 0.0
    %966 = vmatpush1.msra.mxu0 0.0
    %967 = vmatprep.subr.mxu0 0.0
    %968 = vmatpush1.msra.mxu0 0.0
    %969 = vmatprep.subr.mxu0 0.0
    %970 = vmatpush1.msra.mxu0 0.0
    %971 = vmatprep.mubr.f32.mxu0 0.0
    %972 = vmatmul.mubr.f32.gmra.mrb[0].mxu0 %v905
    %v973 = vpop.f32.mrb[0].mxu0
    %v974 = vadd.f32 %v262, %v973
    %v975 = vpop.f32.mrb[0].mxu0
    %976 = vdwg.mxu0
    %v977 = vxor.u32 %v974, 2147483648
    %v978 = vmul.f32 %v977, 1.442695
    %v979 = vpow.pop %v978
    %v980 = vadd.f32 %v979, 1.0
    %v981 = vrcp.pop %v980
    %v982 = vmul.f32 1.0, %v981
    %v983 = vtanh.pop %v974
    %v984 = vmul.f32 %v982, %v780
    %986 = vrot.lane.b32.xlu0 %v983, 64
    %v987 = vpop.permute.xlu0 %986
    %v989 = vmul.f32 %v982, %v987
    %991 = vrot.lane.b32.xlu0 %v989, 32
    %v992 = vpop.permute.xlu0 %991
    %v994 = vadd.f32 %v984, %v992
    %v995 = vtanh.pop %v994
    %997 = vrot.lane.b32.xlu0 %v995, 64
    %v998 = vpop.permute.xlu0 %997
    %v1000 = vmul.f32 %v982, %v998
    %v1001 = vrot.slane %v892, 6
    %1002 = vrot.lane.b32.xlu0 %v1001, 32
    %v1003 = vpop.permute.xlu0 %1002
    %v1004 = vsel %vm154, %v1003, 0
    %1006 = vmatprep.subr.mxu0 0.0
    %1007 = vmatpush1.msra.mxu0 %v45
    %1008 = vmatprep.subr.mxu0 0.0
    %1009 = vmatpush1.msra.mxu0 %v46
    %1010 = vmatprep.subr.mxu0 0.0
    %1011 = vmatpush1.msra.mxu0 %v47
    %1012 = vmatprep.subr.mxu0 0.0
    %1013 = vmatpush1.msra.mxu0 %v48
    %1014 = vmatprep.subr.mxu0 0.0
    %1015 = vmatpush1.msra.mxu0 0.0
    %1016 = vmatprep.subr.mxu0 0.0
    %1017 = vmatpush1.msra.mxu0 0.0
    %1018 = vmatprep.subr.mxu0 0.0
    %1019 = vmatpush1.msra.mxu0 0.0
    %1020 = vmatprep.subr.mxu0 0.0
    %1021 = vmatpush1.msra.mxu0 0.0
    %1022 = vmatprep.subr.mxu0 0.0
    %1023 = vmatpush1.msra.mxu0 0.0
    %1024 = vmatprep.subr.mxu0 0.0
    %1025 = vmatpush1.msra.mxu0 0.0
    %1026 = vmatprep.subr.mxu0 0.0
    %1027 = vmatpush1.msra.mxu0 0.0
    %1028 = vmatprep.subr.mxu0 0.0
    %1029 = vmatpush1.msra.mxu0 0.0
    %1030 = vmatprep.subr.mxu0 0.0
    %1031 = vmatpush1.msra.mxu0 0.0
    %1032 = vmatprep.subr.mxu0 0.0
    %1033 = vmatpush1.msra.mxu0 0.0
    %1034 = vmatprep.subr.mxu0 0.0
    %1035 = vmatpush1.msra.mxu0 0.0
    %1036 = vmatprep.subr.mxu0 0.0
    %1037 = vmatpush1.msra.mxu0 0.0
    %1038 = vmatprep.subr.mxu0 0.0
    %1039 = vmatpush1.msra.mxu0 0.0
    %1040 = vmatprep.subr.mxu0 0.0
    %1041 = vmatpush1.msra.mxu0 0.0
    %1042 = vmatprep.subr.mxu0 0.0
    %1043 = vmatpush1.msra.mxu0 0.0
    %1044 = vmatprep.subr.mxu0 0.0
    %1045 = vmatpush1.msra.mxu0 0.0
    %1046 = vmatprep.subr.mxu0 0.0
    %1047 = vmatpush1.msra.mxu0 0.0
    %1048 = vmatprep.subr.mxu0 0.0
    %1049 = vmatpush1.msra.mxu0 0.0
    %1050 = vmatprep.subr.mxu0 0.0
    %1051 = vmatpush1.msra.mxu0 0.0
    %1052 = vmatprep.subr.mxu0 0.0
    %1053 = vmatpush1.msra.mxu0 0.0
    %1054 = vmatprep.subr.mxu0 0.0
    %1055 = vmatpush1.msra.mxu0 0.0
    %1056 = vmatprep.subr.mxu0 0.0
    %1057 = vmatpush1.msra.mxu0 0.0
    %1058 = vmatprep.subr.mxu0 0.0
    %1059 = vmatpush1.msra.mxu0 0.0
    %1060 = vmatprep.subr.mxu0 0.0
    %1061 = vmatpush1.msra.mxu0 0.0
    %1062 = vmatprep.subr.mxu0 0.0
    %1063 = vmatpush1.msra.mxu0 0.0
    %1064 = vmatprep.subr.mxu0 0.0
    %1065 = vmatpush1.msra.mxu0 0.0
    %1066 = vmatprep.subr.mxu0 0.0
    %1067 = vmatpush1.msra.mxu0 0.0
    %1068 = vmatprep.subr.mxu0 0.0
    %1069 = vmatpush1.msra.mxu0 0.0
    %1070 = vmatprep.mubr.f32.mxu0 0.0
    %1071 = vmatmul.mubr.f32.gmra.mrb[0].mxu0 %v1004
    %v1072 = vpop.f32.mrb[0].mxu0
    %v1073 = vadd.f32 0.0, %v1072
    %v1074 = vpop.f32.mrb[0].mxu0
    %1075 = vdwg.mxu0
    %v1076 = vadd.f32 %v151, %v1073
    %v1077 = vxor.u32 %v1076, 2147483648
    %v1078 = vmul.f32 %v1077, 1.442695
    %v1079 = vpow.pop %v1078
    %v1080 = vadd.f32 %v1079, 1.0
    %v1081 = vrcp.pop %v1080
    %v1082 = vmul.f32 1.0, %v1081
    %v1083 = vtanh.pop %v1076
    %v1085 = vrot.slane %v886, 6
    %v1087 = vmul.f32 %v1082, %v1085
    %1089 = vrot.lane.b32.xlu0 %v1083, 64
    %v1090 = vpop.permute.xlu0 %1089
    %v1092 = vmul.f32 %v1082, %v1090
    %1094 = vrot.lane.b32.xlu0 %v1092, 32
    %v1095 = vpop.permute.xlu0 %1094
    %v1097 = vadd.f32 %v1087, %v1095
    %v1098 = vtanh.pop %v1097
    %1100 = vrot.lane.b32.xlu0 %v1098, 64
    %v1101 = vpop.permute.xlu0 %1100
    %v1103 = vmul.f32 %v1082, %v1101
    %1105 = vrot.lane.b32.xlu0 %v1103, 32
    %v1106 = vpop.permute.xlu0 %1105
    %1109 = vrot.lane.b32.xlu0 %v1000, 64
    %v1110 = vpop.permute.xlu0 %1109
    %v1112 = vsel %vm154, %v1106, %v1110
    %v1114 = vsel %vm264, %v1112, 0
    %1116 = vmatprep.subr.mxu0 0.0
    %1117 = vmatpush1.msra.mxu0 %v49
    %1118 = vmatprep.subr.mxu0 0.0
    %1119 = vmatpush1.msra.mxu0 %v50
    %1120 = vmatprep.subr.mxu0 0.0
    %1121 = vmatpush1.msra.mxu0 %v51
    %1122 = vmatprep.subr.mxu0 0.0
    %1123 = vmatpush1.msra.mxu0 %v52
    %1124 = vmatprep.subr.mxu0 0.0
    %1125 = vmatpush1.msra.mxu0 %v53
    %1126 = vmatprep.subr.mxu0 0.0
    %1127 = vmatpush1.msra.mxu0 %v54
    %1128 = vmatprep.subr.mxu0 0.0
    %1129 = vmatpush1.msra.mxu0 %v55
    %1130 = vmatprep.subr.mxu0 0.0
    %1131 = vmatpush1.msra.mxu0 %v56
    %1132 = vmatprep.subr.mxu0 0.0
    %1133 = vmatpush1.msra.mxu0 0.0
    %1134 = vmatprep.subr.mxu0 0.0
    %1135 = vmatpush1.msra.mxu0 0.0
    %1136 = vmatprep.subr.mxu0 0.0
    %1137 = vmatpush1.msra.mxu0 0.0
    %1138 = vmatprep.subr.mxu0 0.0
    %1139 = vmatpush1.msra.mxu0 0.0
    %1140 = vmatprep.subr.mxu0 0.0
    %1141 = vmatpush1.msra.mxu0 0.0
    %1142 = vmatprep.subr.mxu0 0.0
    %1143 = vmatpush1.msra.mxu0 0.0
    %1144 = vmatprep.subr.mxu0 0.0
    %1145 = vmatpush1.msra.mxu0 0.0
    %1146 = vmatprep.subr.mxu0 0.0
    %1147 = vmatpush1.msra.mxu0 0.0
    %1148 = vmatprep.subr.mxu0 0.0
    %1149 = vmatpush1.msra.mxu0 0.0
    %1150 = vmatprep.subr.mxu0 0.0
    %1151 = vmatpush1.msra.mxu0 0.0
    %1152 = vmatprep.subr.mxu0 0.0
    %1153 = vmatpush1.msra.mxu0 0.0
    %1154 = vmatprep.subr.mxu0 0.0
    %1155 = vmatpush1.msra.mxu0 0.0
    %1156 = vmatprep.subr.mxu0 0.0
    %1157 = vmatpush1.msra.mxu0 0.0
    %1158 = vmatprep.subr.mxu0 0.0
    %1159 = vmatpush1.msra.mxu0 0.0
    %1160 = vmatprep.subr.mxu0 0.0
    %1161 = vmatpush1.msra.mxu0 0.0
    %1162 = vmatprep.subr.mxu0 0.0
    %1163 = vmatpush1.msra.mxu0 0.0
    %1164 = vmatprep.subr.mxu0 0.0
    %1165 = vmatpush1.msra.mxu0 0.0
    %1166 = vmatprep.subr.mxu0 0.0
    %1167 = vmatpush1.msra.mxu0 0.0
    %1168 = vmatprep.subr.mxu0 0.0
    %1169 = vmatpush1.msra.mxu0 0.0
    %1170 = vmatprep.subr.mxu0 0.0
    %1171 = vmatpush1.msra.mxu0 0.0
    %1172 = vmatprep.subr.mxu0 0.0
    %1173 = vmatpush1.msra.mxu0 0.0
    %1174 = vmatprep.subr.mxu0 0.0
    %1175 = vmatpush1.msra.mxu0 0.0
    %1176 = vmatprep.subr.mxu0 0.0
    %1177 = vmatpush1.msra.mxu0 0.0
    %1178 = vmatprep.subr.mxu0 0.0
    %1179 = vmatpush1.msra.mxu0 0.0
    %1180 = vmatprep.mubr.f32.mxu0 0.0
    %1181 = vmatmul.mubr.f32.gmra.mrb[0].mxu0 %v1114
    %v1182 = vpop.f32.mrb[0].mxu0
    %v1183 = vadd.f32 %v262, %v1182
    %v1184 = vpop.f32.mrb[0].mxu0
    %1185 = vdwg.mxu0
    %v1186 = vxor.u32 %v1183, 2147483648
    %v1187 = vmul.f32 %v1186, 1.442695
    %v1188 = vpow.pop %v1187
    %v1189 = vadd.f32 %v1188, 1.0
    %v1190 = vrcp.pop %v1189
    %v1191 = vmul.f32 1.0, %v1190
    %v1192 = vtanh.pop %v1183
    %v1193 = vmul.f32 %v1191, %v994
    %1195 = vrot.lane.b32.xlu0 %v1192, 64
    %v1196 = vpop.permute.xlu0 %1195
    %v1198 = vmul.f32 %v1191, %v1196
    %1200 = vrot.lane.b32.xlu0 %v1198, 32
    %v1201 = vpop.permute.xlu0 %1200
    %v1203 = vadd.f32 %v1193, %v1201
    %v1204 = vtanh.pop %v1203
    %1206 = vrot.lane.b32.xlu0 %v1204, 64
    %v1207 = vpop.permute.xlu0 %1206
    %v1209 = vmul.f32 %v1191, %v1207
    %v1210 = vsel %vm154, %v1106, 0
    %1212 = vmatprep.subr.mxu0 0.0
    %1213 = vmatpush1.msra.mxu0 %v45
    %1214 = vmatprep.subr.mxu0 0.0
    %1215 = vmatpush1.msra.mxu0 %v46
    %1216 = vmatprep.subr.mxu0 0.0
    %1217 = vmatpush1.msra.mxu0 %v47
    %1218 = vmatprep.subr.mxu0 0.0
    %1219 = vmatpush1.msra.mxu0 %v48
    %1220 = vmatprep.subr.mxu0 0.0
    %1221 = vmatpush1.msra.mxu0 0.0
    %1222 = vmatprep.subr.mxu0 0.0
    %1223 = vmatpush1.msra.mxu0 0.0
    %1224 = vmatprep.subr.mxu0 0.0
    %1225 = vmatpush1.msra.mxu0 0.0
    %1226 = vmatprep.subr.mxu0 0.0
    %1227 = vmatpush1.msra.mxu0 0.0
    %1228 = vmatprep.subr.mxu0 0.0
    %1229 = vmatpush1.msra.mxu0 0.0
    %1230 = vmatprep.subr.mxu0 0.0
    %1231 = vmatpush1.msra.mxu0 0.0
    %1232 = vmatprep.subr.mxu0 0.0
    %1233 = vmatpush1.msra.mxu0 0.0
    %1234 = vmatprep.subr.mxu0 0.0
    %1235 = vmatpush1.msra.mxu0 0.0
    %1236 = vmatprep.subr.mxu0 0.0
    %1237 = vmatpush1.msra.mxu0 0.0
    %1238 = vmatprep.subr.mxu0 0.0
    %1239 = vmatpush1.msra.mxu0 0.0
    %1240 = vmatprep.subr.mxu0 0.0
    %1241 = vmatpush1.msra.mxu0 0.0
    %1242 = vmatprep.subr.mxu0 0.0
    %1243 = vmatpush1.msra.mxu0 0.0
    %1244 = vmatprep.subr.mxu0 0.0
    %1245 = vmatpush1.msra.mxu0 0.0
    %1246 = vmatprep.subr.mxu0 0.0
    %1247 = vmatpush1.msra.mxu0 0.0
    %1248 = vmatprep.subr.mxu0 0.0
    %1249 = vmatpush1.msra.mxu0 0.0
    %1250 = vmatprep.subr.mxu0 0.0
    %1251 = vmatpush1.msra.mxu0 0.0
    %1252 = vmatprep.subr.mxu0 0.0
    %1253 = vmatpush1.msra.mxu0 0.0
    %1254 = vmatprep.subr.mxu0 0.0
    %1255 = vmatpush1.msra.mxu0 0.0
    %1256 = vmatprep.subr.mxu0 0.0
    %1257 = vmatpush1.msra.mxu0 0.0
    %1258 = vmatprep.subr.mxu0 0.0
    %1259 = vmatpush1.msra.mxu0 0.0
    %1260 = vmatprep.subr.mxu0 0.0
    %1261 = vmatpush1.msra.mxu0 0.0
    %1262 = vmatprep.subr.mxu0 0.0
    %1263 = vmatpush1.msra.mxu0 0.0
    %1264 = vmatprep.subr.mxu0 0.0
    %1265 = vmatpush1.msra.mxu0 0.0
    %1266 = vmatprep.subr.mxu0 0.0
    %1267 = vmatpush1.msra.mxu0 0.0
    %1268 = vmatprep.subr.mxu0 0.0
    %1269 = vmatpush1.msra.mxu0 0.0
    %1270 = vmatprep.subr.mxu0 0.0
    %1271 = vmatpush1.msra.mxu0 0.0
    %1272 = vmatprep.subr.mxu0 0.0
    %1273 = vmatpush1.msra.mxu0 0.0
    %1274 = vmatprep.subr.mxu0 0.0
    %1275 = vmatpush1.msra.mxu0 0.0
    %1276 = vmatprep.mubr.f32.mxu0 0.0
    %1277 = vmatmul.mubr.f32.gmra.mrb[0].mxu0 %v1210
    %v1278 = vpop.f32.mrb[0].mxu0
    %v1279 = vadd.f32 0.0, %v1278
    %v1280 = vpop.f32.mrb[0].mxu0
    %1281 = vdwg.mxu0
    %v1283 = vrot.slane %v1279, 6
    %v1285 = vadd.f32 %v151, %v1283
    %v1286 = vxor.u32 %v1285, 2147483648
    %v1287 = vmul.f32 %v1286, 1.442695
    %v1288 = vpow.pop %v1287
    %v1289 = vadd.f32 %v1288, 1.0
    %v1290 = vrcp.pop %v1289
    %v1291 = vmul.f32 1.0, %v1290
    %v1292 = vtanh.pop %v1285
    %v1294 = vrot.slane %v1097, 6
    %v1296 = vmul.f32 %v1291, %v1294
    %1298 = vrot.lane.b32.xlu0 %v1292, 64
    %v1299 = vpop.permute.xlu0 %1298
    %v1301 = vmul.f32 %v1291, %v1299
    %1303 = vrot.lane.b32.xlu0 %v1301, 32
    %v1304 = vpop.permute.xlu0 %1303
    %v1306 = vadd.f32 %v1296, %v1304
    %v1307 = vtanh.pop %v1306
    %1309 = vrot.lane.b32.xlu0 %v1307, 64
    %v1310 = vpop.permute.xlu0 %1309
    %v1312 = vmul.f32 %v1291, %v1310
    %1314 = vrot.lane.b32.xlu0 %v1312, 32
    %v1315 = vpop.permute.xlu0 %1314
    %v1318 = vrot.slane %v1209, 6
    %1319 = vrot.lane.b32.xlu0 %v1318, 64
    %v1320 = vpop.permute.xlu0 %1319
    %v1322 = vsel %vm154, %v1315, %v1320
    %v1324 = vrot.slane %v1322, 2
    %v1325 = vsel %vm264, %v1324, 0
    %1327 = vmatprep.subr.mxu0 0.0
    %1328 = vmatpush1.msra.mxu0 %v49
    %1329 = vmatprep.subr.mxu0 0.0
    %1330 = vmatpush1.msra.mxu0 %v50
    %1331 = vmatprep.subr.mxu0 0.0
    %1332 = vmatpush1.msra.mxu0 %v51
    %1333 = vmatprep.subr.mxu0 0.0
    %1334 = vmatpush1.msra.mxu0 %v52
    %1335 = vmatprep.subr.mxu0 0.0
    %1336 = vmatpush1.msra.mxu0 %v53
    %1337 = vmatprep.subr.mxu0 0.0
    %1338 = vmatpush1.msra.mxu0 %v54
    %1339 = vmatprep.subr.mxu0 0.0
    %1340 = vmatpush1.msra.mxu0 %v55
    %1341 = vmatprep.subr.mxu0 0.0
    %1342 = vmatpush1.msra.mxu0 %v56
    %1343 = vmatprep.subr.mxu0 0.0
    %1344 = vmatpush1.msra.mxu0 0.0
    %1345 = vmatprep.subr.mxu0 0.0
    %1346 = vmatpush1.msra.mxu0 0.0
    %1347 = vmatprep.subr.mxu0 0.0
    %1348 = vmatpush1.msra.mxu0 0.0
    %1349 = vmatprep.subr.mxu0 0.0
    %1350 = vmatpush1.msra.mxu0 0.0
    %1351 = vmatprep.subr.mxu0 0.0
    %1352 = vmatpush1.msra.mxu0 0.0
    %1353 = vmatprep.subr.mxu0 0.0
    %1354 = vmatpush1.msra.mxu0 0.0
    %1355 = vmatprep.subr.mxu0 0.0
    %1356 = vmatpush1.msra.mxu0 0.0
    %1357 = vmatprep.subr.mxu0 0.0
    %1358 = vmatpush1.msra.mxu0 0.0
    %1359 = vmatprep.subr.mxu0 0.0
    %1360 = vmatpush1.msra.mxu0 0.0
    %1361 = vmatprep.subr.mxu0 0.0
    %1362 = vmatpush1.msra.mxu0 0.0
    %1363 = vmatprep.subr.mxu0 0.0
    %1364 = vmatpush1.msra.mxu0 0.0
    %1365 = vmatprep.subr.mxu0 0.0
    %1366 = vmatpush1.msra.mxu0 0.0
    %1367 = vmatprep.subr.mxu0 0.0
    %1368 = vmatpush1.msra.mxu0 0.0
    %1369 = vmatprep.subr.mxu0 0.0
    %1370 = vmatpush1.msra.mxu0 0.0
    %1371 = vmatprep.subr.mxu0 0.0
    %1372 = vmatpush1.msra.mxu0 0.0
    %1373 = vmatprep.subr.mxu0 0.0
    %1374 = vmatpush1.msra.mxu0 0.0
    %1375 = vmatprep.subr.mxu0 0.0
    %1376 = vmatpush1.msra.mxu0 0.0
    %1377 = vmatprep.subr.mxu0 0.0
    %1378 = vmatpush1.msra.mxu0 0.0
    %1379 = vmatprep.subr.mxu0 0.0
    %1380 = vmatpush1.msra.mxu0 0.0
    %1381 = vmatprep.subr.mxu0 0.0
    %1382 = vmatpush1.msra.mxu0 0.0
    %1383 = vmatprep.subr.mxu0 0.0
    %1384 = vmatpush1.msra.mxu0 0.0
    %1385 = vmatprep.subr.mxu0 0.0
    %1386 = vmatpush1.msra.mxu0 0.0
    %1387 = vmatprep.subr.mxu0 0.0
    %1388 = vmatpush1.msra.mxu0 0.0
    %1389 = vmatprep.subr.mxu0 0.0
    %1390 = vmatpush1.msra.mxu0 0.0
    %1391 = vmatprep.mubr.f32.mxu0 0.0
    %1392 = vmatmul.mubr.f32.gmra.mrb[0].mxu0 %v1325
    %v1393 = vpop.f32.mrb[0].mxu0
    %v1394 = vadd.f32 %v262, %v1393
    %v1395 = vpop.f32.mrb[0].mxu0
    %1396 = vdwg.mxu0
    %v1397 = vxor.u32 %v1394, 2147483648
    %v1398 = vmul.f32 %v1397, 1.442695
    %v1399 = vpow.pop %v1398
    %v1400 = vadd.f32 %v1399, 1.0
    %v1401 = vrcp.pop %v1400
    %v1402 = vmul.f32 1.0, %v1401
    %v1403 = vtanh.pop %v1394
    %v1404 = vmul.f32 %v1402, %v1203
    %1406 = vrot.lane.b32.xlu0 %v1403, 64
    %v1407 = vpop.permute.xlu0 %1406
    %v1409 = vmul.f32 %v1402, %v1407
    %1411 = vrot.lane.b32.xlu0 %v1409, 32
    %v1412 = vpop.permute.xlu0 %1411
    %v1414 = vadd.f32 %v1404, %v1412
    %v1415 = vtanh.pop %v1414
    %1417 = vrot.lane.b32.xlu0 %v1415, 64
    %v1418 = vpop.permute.xlu0 %1417
    %v1420 = vmul.f32 %v1402, %v1418
    %v1421 = vrot.slane %v1312, 2
    %1422 = vrot.lane.b32.xlu0 %v1421, 32
    %v1423 = vpop.permute.xlu0 %1422
    %v1424 = vsel %vm154, %v1423, 0
    %1426 = vmatprep.subr.mxu0 0.0
    %1427 = vmatpush1.msra.mxu0 %v45
    %1428 = vmatprep.subr.mxu0 0.0
    %1429 = vmatpush1.msra.mxu0 %v46
    %1430 = vmatprep.subr.mxu0 0.0
    %1431 = vmatpush1.msra.mxu0 %v47
    %1432 = vmatprep.subr.mxu0 0.0
    %1433 = vmatpush1.msra.mxu0 %v48
    %1434 = vmatprep.subr.mxu0 0.0
    %1435 = vmatpush1.msra.mxu0 0.0
    %1436 = vmatprep.subr.mxu0 0.0
    %1437 = vmatpush1.msra.mxu0 0.0
    %1438 = vmatprep.subr.mxu0 0.0
    %1439 = vmatpush1.msra.mxu0 0.0
    %1440 = vmatprep.subr.mxu0 0.0
    %1441 = vmatpush1.msra.mxu0 0.0
    %1442 = vmatprep.subr.mxu0 0.0
    %1443 = vmatpush1.msra.mxu0 0.0
    %1444 = vmatprep.subr.mxu0 0.0
    %1445 = vmatpush1.msra.mxu0 0.0
    %1446 = vmatprep.subr.mxu0 0.0
    %1447 = vmatpush1.msra.mxu0 0.0
    %1448 = vmatprep.subr.mxu0 0.0
    %1449 = vmatpush1.msra.mxu0 0.0
    %1450 = vmatprep.subr.mxu0 0.0
    %1451 = vmatpush1.msra.mxu0 0.0
    %1452 = vmatprep.subr.mxu0 0.0
    %1453 = vmatpush1.msra.mxu0 0.0
    %1454 = vmatprep.subr.mxu0 0.0
    %1455 = vmatpush1.msra.mxu0 0.0
    %1456 = vmatprep.subr.mxu0 0.0
    %1457 = vmatpush1.msra.mxu0 0.0
    %1458 = vmatprep.subr.mxu0 0.0
    %1459 = vmatpush1.msra.mxu0 0.0
    %1460 = vmatprep.subr.mxu0 0.0
    %1461 = vmatpush1.msra.mxu0 0.0
    %1462 = vmatprep.subr.mxu0 0.0
    %1463 = vmatpush1.msra.mxu0 0.0
    %1464 = vmatprep.subr.mxu0 0.0
    %1465 = vmatpush1.msra.mxu0 0.0
    %1466 = vmatprep.subr.mxu0 0.0
    %1467 = vmatpush1.msra.mxu0 0.0
    %1468 = vmatprep.subr.mxu0 0.0
    %1469 = vmatpush1.msra.mxu0 0.0
    %1470 = vmatprep.subr.mxu0 0.0
    %1471 = vmatpush1.msra.mxu0 0.0
    %1472 = vmatprep.subr.mxu0 0.0
    %1473 = vmatpush1.msra.mxu0 0.0
    %1474 = vmatprep.subr.mxu0 0.0
    %1475 = vmatpush1.msra.mxu0 0.0
    %1476 = vmatprep.subr.mxu0 0.0
    %1477 = vmatpush1.msra.mxu0 0.0
    %1478 = vmatprep.subr.mxu0 0.0
    %1479 = vmatpush1.msra.mxu0 0.0
    %1480 = vmatprep.subr.mxu0 0.0
    %1481 = vmatpush1.msra.mxu0 0.0
    %1482 = vmatprep.subr.mxu0 0.0
    %1483 = vmatpush1.msra.mxu0 0.0
    %1484 = vmatprep.subr.mxu0 0.0
    %1485 = vmatpush1.msra.mxu0 0.0
    %1486 = vmatprep.subr.mxu0 0.0
    %1487 = vmatpush1.msra.mxu0 0.0
    %1488 = vmatprep.subr.mxu0 0.0
    %1489 = vmatpush1.msra.mxu0 0.0
    %1490 = vmatprep.mubr.f32.mxu0 0.0
    %1491 = vmatmul.mubr.f32.gmra.mrb[0].mxu0 %v1424
    %v1492 = vpop.f32.mrb[0].mxu0
    %v1493 = vadd.f32 0.0, %v1492
    %v1494 = vpop.f32.mrb[0].mxu0
    %1495 = vdwg.mxu0
    %v1497 = vrot.slane %v1493, 4
    %v1499 = vadd.f32 %v151, %v1497
    %v1500 = vxor.u32 %v1499, 2147483648
    %v1501 = vmul.f32 %v1500, 1.442695
    %v1502 = vpow.pop %v1501
    %v1503 = vadd.f32 %v1502, 1.0
    %v1504 = vrcp.pop %v1503
    %v1505 = vmul.f32 1.0, %v1504
    %v1506 = vtanh.pop %v1499
    %v1508 = vrot.slane %v1306, 6
    %v1510 = vmul.f32 %v1505, %v1508
    %1512 = vrot.lane.b32.xlu0 %v1506, 64
    %v1513 = vpop.permute.xlu0 %1512
    %v1515 = vmul.f32 %v1505, %v1513
    %1517 = vrot.lane.b32.xlu0 %v1515, 32
    %v1518 = vpop.permute.xlu0 %1517
    %v1520 = vadd.f32 %v1510, %v1518
    %v1521 = vtanh.pop %v1520
    %1523 = vrot.lane.b32.xlu0 %v1521, 64
    %v1524 = vpop.permute.xlu0 %1523
    %v1526 = vmul.f32 %v1505, %v1524
    %1528 = vrot.lane.b32.xlu0 %v1526, 32
    %v1529 = vpop.permute.xlu0 %1528
    %v1532 = vrot.slane %v1420, 4
    %1533 = vrot.lane.b32.xlu0 %v1532, 64
    %v1534 = vpop.permute.xlu0 %1533
    %v1536 = vsel %vm154, %v1529, %v1534
    %v1538 = vrot.slane %v1536, 4
    %v1539 = vsel %vm264, %v1538, 0
    %1541 = vmatprep.subr.mxu0 0.0
    %1542 = vmatpush1.msra.mxu0 %v49
    %1543 = vmatprep.subr.mxu0 0.0
    %1544 = vmatpush1.msra.mxu0 %v50
    %1545 = vmatprep.subr.mxu0 0.0
    %1546 = vmatpush1.msra.mxu0 %v51
    %1547 = vmatprep.subr.mxu0 0.0
    %1548 = vmatpush1.msra.mxu0 %v52
    %1549 = vmatprep.subr.mxu0 0.0
    %1550 = vmatpush1.msra.mxu0 %v53
    %1551 = vmatprep.subr.mxu0 0.0
    %1552 = vmatpush1.msra.mxu0 %v54
    %1553 = vmatprep.subr.mxu0 0.0
    %1554 = vmatpush1.msra.mxu0 %v55
    %1555 = vmatprep.subr.mxu0 0.0
    %1556 = vmatpush1.msra.mxu0 %v56
    %1557 = vmatprep.subr.mxu0 0.0
    %1558 = vmatpush1.msra.mxu0 0.0
    %1559 = vmatprep.subr.mxu0 0.0
    %1560 = vmatpush1.msra.mxu0 0.0
    %1561 = vmatprep.subr.mxu0 0.0
    %1562 = vmatpush1.msra.mxu0 0.0
    %1563 = vmatprep.subr.mxu0 0.0
    %1564 = vmatpush1.msra.mxu0 0.0
    %1565 = vmatprep.subr.mxu0 0.0
    %1566 = vmatpush1.msra.mxu0 0.0
    %1567 = vmatprep.subr.mxu0 0.0
    %1568 = vmatpush1.msra.mxu0 0.0
    %1569 = vmatprep.subr.mxu0 0.0
    %1570 = vmatpush1.msra.mxu0 0.0
    %1571 = vmatprep.subr.mxu0 0.0
    %1572 = vmatpush1.msra.mxu0 0.0
    %1573 = vmatprep.subr.mxu0 0.0
    %1574 = vmatpush1.msra.mxu0 0.0
    %1575 = vmatprep.subr.mxu0 0.0
    %1576 = vmatpush1.msra.mxu0 0.0
    %1577 = vmatprep.subr.mxu0 0.0
    %1578 = vmatpush1.msra.mxu0 0.0
    %1579 = vmatprep.subr.mxu0 0.0
    %1580 = vmatpush1.msra.mxu0 0.0
    %1581 = vmatprep.subr.mxu0 0.0
    %1582 = vmatpush1.msra.mxu0 0.0
    %1583 = vmatprep.subr.mxu0 0.0
    %1584 = vmatpush1.msra.mxu0 0.0
    %1585 = vmatprep.subr.mxu0 0.0
    %1586 = vmatpush1.msra.mxu0 0.0
    %1587 = vmatprep.subr.mxu0 0.0
    %1588 = vmatpush1.msra.mxu0 0.0
    %1589 = vmatprep.subr.mxu0 0.0
    %1590 = vmatpush1.msra.mxu0 0.0
    %1591 = vmatprep.subr.mxu0 0.0
    %1592 = vmatpush1.msra.mxu0 0.0
    %1593 = vmatprep.subr.mxu0 0.0
    %1594 = vmatpush1.msra.mxu0 0.0
    %1595 = vmatprep.subr.mxu0 0.0
    %1596 = vmatpush1.msra.mxu0 0.0
    %1597 = vmatprep.subr.mxu0 0.0
    %1598 = vmatpush1.msra.mxu0 0.0
    %1599 = vmatprep.subr.mxu0 0.0
    %1600 = vmatpush1.msra.mxu0 0.0
    %1601 = vmatprep.subr.mxu0 0.0
    %1602 = vmatpush1.msra.mxu0 0.0
    %1603 = vmatprep.subr.mxu0 0.0
    %1604 = vmatpush1.msra.mxu0 0.0
    %1605 = vmatprep.mubr.f32.mxu0 0.0
    %1606 = vmatmul.mubr.f32.gmra.mrb[0].mxu0 %v1539
    %v1607 = vpop.f32.mrb[0].mxu0
    %v1608 = vadd.f32 %v262, %v1607
    %v1609 = vpop.f32.mrb[0].mxu0
    %1610 = vdwg.mxu0
    %v1611 = vxor.u32 %v1608, 2147483648
    %v1612 = vmul.f32 %v1611, 1.442695
    %v1613 = vpow.pop %v1612
    %v1614 = vadd.f32 %v1613, 1.0
    %v1615 = vrcp.pop %v1614
    %v1616 = vmul.f32 1.0, %v1615
    %v1617 = vtanh.pop %v1608
    %v1618 = vmul.f32 %v1616, %v1414
    %1620 = vrot.lane.b32.xlu0 %v1617, 64
    %v1621 = vpop.permute.xlu0 %1620
    %v1623 = vmul.f32 %v1616, %v1621
    %1625 = vrot.lane.b32.xlu0 %v1623, 32
    %v1626 = vpop.permute.xlu0 %1625
    %v1628 = vadd.f32 %v1618, %v1626
    %v1629 = vtanh.pop %v1628
    %1631 = vrot.lane.b32.xlu0 %v1629, 64
    %v1632 = vpop.permute.xlu0 %1631
    %v1634 = vmul.f32 %v1616, %v1632
    %v1635 = vrot.slane %v1526, 4
    %1636 = vrot.lane.b32.xlu0 %v1635, 32
    %v1637 = vpop.permute.xlu0 %1636
    %v1638 = vsel %vm154, %v1637, 0
    %1640 = vmatprep.subr.mxu0 0.0
    %1641 = vmatpush1.msra.mxu0 %v45
    %1642 = vmatprep.subr.mxu0 0.0
    %1643 = vmatpush1.msra.mxu0 %v46
    %1644 = vmatprep.subr.mxu0 0.0
    %1645 = vmatpush1.msra.mxu0 %v47
    %1646 = vmatprep.subr.mxu0 0.0
    %1647 = vmatpush1.msra.mxu0 %v48
    %1648 = vmatprep.subr.mxu0 0.0
    %1649 = vmatpush1.msra.mxu0 0.0
    %1650 = vmatprep.subr.mxu0 0.0
    %1651 = vmatpush1.msra.mxu0 0.0
    %1652 = vmatprep.subr.mxu0 0.0
    %1653 = vmatpush1.msra.mxu0 0.0
    %1654 = vmatprep.subr.mxu0 0.0
    %1655 = vmatpush1.msra.mxu0 0.0
    %1656 = vmatprep.subr.mxu0 0.0
    %1657 = vmatpush1.msra.mxu0 0.0
    %1658 = vmatprep.subr.mxu0 0.0
    %1659 = vmatpush1.msra.mxu0 0.0
    %1660 = vmatprep.subr.mxu0 0.0
    %1661 = vmatpush1.msra.mxu0 0.0
    %1662 = vmatprep.subr.mxu0 0.0
    %1663 = vmatpush1.msra.mxu0 0.0
    %1664 = vmatprep.subr.mxu0 0.0
    %1665 = vmatpush1.msra.mxu0 0.0
    %1666 = vmatprep.subr.mxu0 0.0
    %1667 = vmatpush1.msra.mxu0 0.0
    %1668 = vmatprep.subr.mxu0 0.0
    %1669 = vmatpush1.msra.mxu0 0.0
    %1670 = vmatprep.subr.mxu0 0.0
    %1671 = vmatpush1.msra.mxu0 0.0
    %1672 = vmatprep.subr.mxu0 0.0
    %1673 = vmatpush1.msra.mxu0 0.0
    %1674 = vmatprep.subr.mxu0 0.0
    %1675 = vmatpush1.msra.mxu0 0.0
    %1676 = vmatprep.subr.mxu0 0.0
    %1677 = vmatpush1.msra.mxu0 0.0
    %1678 = vmatprep.subr.mxu0 0.0
    %1679 = vmatpush1.msra.mxu0 0.0
    %1680 = vmatprep.subr.mxu0 0.0
    %1681 = vmatpush1.msra.mxu0 0.0
    %1682 = vmatprep.subr.mxu0 0.0
    %1683 = vmatpush1.msra.mxu0 0.0
    %1684 = vmatprep.subr.mxu0 0.0
    %1685 = vmatpush1.msra.mxu0 0.0
    %1686 = vmatprep.subr.mxu0 0.0
    %1687 = vmatpush1.msra.mxu0 0.0
    %1688 = vmatprep.subr.mxu0 0.0
    %1689 = vmatpush1.msra.mxu0 0.0
    %1690 = vmatprep.subr.mxu0 0.0
    %1691 = vmatpush1.msra.mxu0 0.0
    %1692 = vmatprep.subr.mxu0 0.0
    %1693 = vmatpush1.msra.mxu0 0.0
    %1694 = vmatprep.subr.mxu0 0.0
    %1695 = vmatpush1.msra.mxu0 0.0
    %1696 = vmatprep.subr.mxu0 0.0
    %1697 = vmatpush1.msra.mxu0 0.0
    %1698 = vmatprep.subr.mxu0 0.0
    %1699 = vmatpush1.msra.mxu0 0.0
    %1700 = vmatprep.subr.mxu0 0.0
    %1701 = vmatpush1.msra.mxu0 0.0
    %1702 = vmatprep.subr.mxu0 0.0
    %1703 = vmatpush1.msra.mxu0 0.0
    %1704 = vmatprep.mubr.f32.mxu0 0.0
    %1705 = vmatmul.mubr.f32.gmra.mrb[0].mxu0 %v1638
    %v1706 = vpop.f32.mrb[0].mxu0
    %v1707 = vadd.f32 0.0, %v1706
    %v1708 = vpop.f32.mrb[0].mxu0
    %1709 = vdwg.mxu0
    %v1711 = vrot.slane %v1707, 2
    %v1713 = vadd.f32 %v151, %v1711
    %v1714 = vxor.u32 %v1713, 2147483648
    %v1715 = vmul.f32 %v1714, 1.442695
    %v1716 = vpow.pop %v1715
    %v1717 = vadd.f32 %v1716, 1.0
    %v1718 = vrcp.pop %v1717
    %v1719 = vmul.f32 1.0, %v1718
    %v1720 = vtanh.pop %v1713
    %v1722 = vrot.slane %v1520, 6
    %v1724 = vmul.f32 %v1719, %v1722
    %1726 = vrot.lane.b32.xlu0 %v1720, 64
    %v1727 = vpop.permute.xlu0 %1726
    %v1729 = vmul.f32 %v1719, %v1727
    %1731 = vrot.lane.b32.xlu0 %v1729, 32
    %v1732 = vpop.permute.xlu0 %1731
    %v1734 = vadd.f32 %v1724, %v1732
    %v1735 = vtanh.pop %v1734
    %1737 = vrot.lane.b32.xlu0 %v1735, 64
    %v1738 = vpop.permute.xlu0 %1737
    %v1740 = vmul.f32 %v1719, %v1738
    %1742 = vrot.lane.b32.xlu0 %v1740, 32
    %v1743 = vpop.permute.xlu0 %1742
    %v1746 = vrot.slane %v1634, 2
    %1747 = vrot.lane.b32.xlu0 %v1746, 64
    %v1748 = vpop.permute.xlu0 %1747
    %v1750 = vsel %vm154, %v1743, %v1748
    %v1752 = vrot.slane %v1750, 6
    %v1753 = vsel %vm264, %v1752, 0
    %1755 = vmatprep.subr.mxu0 0.0
    %1756 = vmatpush1.msra.mxu0 %v49
    %1757 = vmatprep.subr.mxu0 0.0
    %1758 = vmatpush1.msra.mxu0 %v50
    %1759 = vmatprep.subr.mxu0 0.0
    %1760 = vmatpush1.msra.mxu0 %v51
    %1761 = vmatprep.subr.mxu0 0.0
    %1762 = vmatpush1.msra.mxu0 %v52
    %1763 = vmatprep.subr.mxu0 0.0
    %1764 = vmatpush1.msra.mxu0 %v53
    %1765 = vmatprep.subr.mxu0 0.0
    %1766 = vmatpush1.msra.mxu0 %v54
    %1767 = vmatprep.subr.mxu0 0.0
    %1768 = vmatpush1.msra.mxu0 %v55
    %1769 = vmatprep.subr.mxu0 0.0
    %1770 = vmatpush1.msra.mxu0 %v56
    %1771 = vmatprep.subr.mxu0 0.0
    %1772 = vmatpush1.msra.mxu0 0.0
    %1773 = vmatprep.subr.mxu0 0.0
    %1774 = vmatpush1.msra.mxu0 0.0
    %1775 = vmatprep.subr.mxu0 0.0
    %1776 = vmatpush1.msra.mxu0 0.0
    %1777 = vmatprep.subr.mxu0 0.0
    %1778 = vmatpush1.msra.mxu0 0.0
    %1779 = vmatprep.subr.mxu0 0.0
    %1780 = vmatpush1.msra.mxu0 0.0
    %1781 = vmatprep.subr.mxu0 0.0
    %1782 = vmatpush1.msra.mxu0 0.0
    %1783 = vmatprep.subr.mxu0 0.0
    %1784 = vmatpush1.msra.mxu0 0.0
    %1785 = vmatprep.subr.mxu0 0.0
    %1786 = vmatpush1.msra.mxu0 0.0
    %1787 = vmatprep.subr.mxu0 0.0
    %1788 = vmatpush1.msra.mxu0 0.0
    %1789 = vmatprep.subr.mxu0 0.0
    %1790 = vmatpush1.msra.mxu0 0.0
    %1791 = vmatprep.subr.mxu0 0.0
    %1792 = vmatpush1.msra.mxu0 0.0
    %1793 = vmatprep.subr.mxu0 0.0
    %1794 = vmatpush1.msra.mxu0 0.0
    %1795 = vmatprep.subr.mxu0 0.0
    %1796 = vmatpush1.msra.mxu0 0.0
    %1797 = vmatprep.subr.mxu0 0.0
    %1798 = vmatpush1.msra.mxu0 0.0
    %1799 = vmatprep.subr.mxu0 0.0
    %1800 = vmatpush1.msra.mxu0 0.0
    %1801 = vmatprep.subr.mxu0 0.0
    %1802 = vmatpush1.msra.mxu0 0.0
    %1803 = vmatprep.subr.mxu0 0.0
    %1804 = vmatpush1.msra.mxu0 0.0
    %1805 = vmatprep.subr.mxu0 0.0
    %1806 = vmatpush1.msra.mxu0 0.0
    %1807 = vmatprep.subr.mxu0 0.0
    %1808 = vmatpush1.msra.mxu0 0.0
    %1809 = vmatprep.subr.mxu0 0.0
    %1810 = vmatpush1.msra.mxu0 0.0
    %1811 = vmatprep.subr.mxu0 0.0
    %1812 = vmatpush1.msra.mxu0 0.0
    %1813 = vmatprep.subr.mxu0 0.0
    %1814 = vmatpush1.msra.mxu0 0.0
    %1815 = vmatprep.subr.mxu0 0.0
    %1816 = vmatpush1.msra.mxu0 0.0
    %1817 = vmatprep.subr.mxu0 0.0
    %1818 = vmatpush1.msra.mxu0 0.0
    %1819 = vmatprep.mubr.f32.mxu0 0.0
    %1820 = vmatmul.mubr.f32.gmra.mrb[0].mxu0 %v1753
    %v1821 = vpop.f32.mrb[0].mxu0
    %v1822 = vadd.f32 %v262, %v1821
    %v1823 = vpop.f32.mrb[0].mxu0
    %1824 = vdwg.mxu0
    %v1825 = vxor.u32 %v1822, 2147483648
    %v1826 = vmul.f32 %v1825, 1.442695
    %v1827 = vpow.pop %v1826
    %v1828 = vadd.f32 %v1827, 1.0
    %v1829 = vrcp.pop %v1828
    %v1830 = vmul.f32 1.0, %v1829
    %v1831 = vtanh.pop %v1822
    %v1832 = vmul.f32 %v1830, %v1628
    %1834 = vrot.lane.b32.xlu0 %v1831, 64
    %v1835 = vpop.permute.xlu0 %1834
    %v1837 = vmul.f32 %v1830, %v1835
    %1839 = vrot.lane.b32.xlu0 %v1837, 32
    %v1840 = vpop.permute.xlu0 %1839
    %v1842 = vadd.f32 %v1832, %v1840
    %v1843 = vtanh.pop %v1842
    %1845 = vrot.lane.b32.xlu0 %v1843, 64
    %v1846 = vpop.permute.xlu0 %1845
    %v1848 = vmul.f32 %v1830, %v1846
    %v1849 = vld [vmem:[%s6] sm:$0xff]
    %v1850 = vld [vmem:[%s6 + $0x8] sm:$0xff]
    %v1851 = vld [vmem:[%s6 + $0x10] sm:$0xff]
    %v1852 = vld [vmem:[%s6 + $0x18] sm:$0xff]
    %v1853 = vld [vmem:[#allocation2] sm:$0x1]
    %v1855 = vlaneseq
    %v1856 = vshrl.u32 %v1855, 7
    %v1857 = vsub.s32 0, %v1856
    %v1858 = vrot.slane %v1853, %v1857
    %1861 = vrot.lane.b32.xlu0 %v1848, 32
    %v1862 = vpop.permute.xlu0 %1861
    %v1863 = vsel %vm154, %v1862, 0
    %1865 = vmatprep.subr.mxu0 0.0
    %1866 = vmatpush1.msra.mxu0 %v1849
    %1867 = vmatprep.subr.mxu0 0.0
    %1868 = vmatpush1.msra.mxu0 %v1850
    %1869 = vmatprep.subr.mxu0 0.0
    %1870 = vmatpush1.msra.mxu0 %v1851
    %1871 = vmatprep.subr.mxu0 0.0
    %1872 = vmatpush1.msra.mxu0 %v1852
    %1873 = vmatprep.subr.mxu0 0.0
    %1874 = vmatpush1.msra.mxu0 0.0
    %1875 = vmatprep.subr.mxu0 0.0
    %1876 = vmatpush1.msra.mxu0 0.0
    %1877 = vmatprep.subr.mxu0 0.0
    %1878 = vmatpush1.msra.mxu0 0.0
    %1879 = vmatprep.subr.mxu0 0.0
    %1880 = vmatpush1.msra.mxu0 0.0
    %1881 = vmatprep.subr.mxu0 0.0
    %1882 = vmatpush1.msra.mxu0 0.0
    %1883 = vmatprep.subr.mxu0 0.0
    %1884 = vmatpush1.msra.mxu0 0.0
    %1885 = vmatprep.subr.mxu0 0.0
    %1886 = vmatpush1.msra.mxu0 0.0
    %1887 = vmatprep.subr.mxu0 0.0
    %1888 = vmatpush1.msra.mxu0 0.0
    %1889 = vmatprep.subr.mxu0 0.0
    %1890 = vmatpush1.msra.mxu0 0.0
    %1891 = vmatprep.subr.mxu0 0.0
    %1892 = vmatpush1.msra.mxu0 0.0
    %1893 = vmatprep.subr.mxu0 0.0
    %1894 = vmatpush1.msra.mxu0 0.0
    %1895 = vmatprep.subr.mxu0 0.0
    %1896 = vmatpush1.msra.mxu0 0.0
    %1897 = vmatprep.subr.mxu0 0.0
    %1898 = vmatpush1.msra.mxu0 0.0
    %1899 = vmatprep.subr.mxu0 0.0
    %1900 = vmatpush1.msra.mxu0 0.0
    %1901 = vmatprep.subr.mxu0 0.0
    %1902 = vmatpush1.msra.mxu0 0.0
    %1903 = vmatprep.subr.mxu0 0.0
    %1904 = vmatpush1.msra.mxu0 0.0
    %1905 = vmatprep.subr.mxu0 0.0
    %1906 = vmatpush1.msra.mxu0 0.0
    %1907 = vmatprep.subr.mxu0 0.0
    %1908 = vmatpush1.msra.mxu0 0.0
    %1909 = vmatprep.subr.mxu0 0.0
    %1910 = vmatpush1.msra.mxu0 0.0
    %1911 = vmatprep.subr.mxu0 0.0
    %1912 = vmatpush1.msra.mxu0 0.0
    %1913 = vmatprep.subr.mxu0 0.0
    %1914 = vmatpush1.msra.mxu0 0.0
    %1915 = vmatprep.subr.mxu0 0.0
    %1916 = vmatpush1.msra.mxu0 0.0
    %1917 = vmatprep.subr.mxu0 0.0
    %1918 = vmatpush1.msra.mxu0 0.0
    %1919 = vmatprep.subr.mxu0 0.0
    %1920 = vmatpush1.msra.mxu0 0.0
    %1921 = vmatprep.subr.mxu0 0.0
    %1922 = vmatpush1.msra.mxu0 0.0
    %1923 = vmatprep.subr.mxu0 0.0
    %1924 = vmatpush1.msra.mxu0 0.0
    %1925 = vmatprep.subr.mxu0 0.0
    %1926 = vmatpush1.msra.mxu0 0.0
    %1927 = vmatprep.subr.mxu0 0.0
    %1928 = vmatpush1.msra.mxu0 0.0
    %1929 = vmatprep.mubr.f32.mxu0 0.0
    %1930 = vmatmul.mubr.f32.gmra.mrb[0].mxu0 %v1863
    %v1931 = vpop.f32.mrb[0].mxu0
    %v1932 = vadd.f32 %v1858, %v1931
    %v1933 = vpop.f32.mrb[0].mxu0
    %1934 = vdwg.mxu0
    %vm1935 = vcmask 1024
    %1936 = vst.msk [vmem:[%s8] sm:$0x3] %vm1935, %v1932
    // Predicated region
    $region38: #{tpu_custom_call.1} parent=1 // pred_check
      _
    $region39: #{tpu_custom_call.1} parent=1 // pred_check_branch
      %1938 = sbr.rel (0) target = $region41
    $region40: #{tpu_custom_call.1} parent=1 // pred_region
      _
    $region41: #{tpu_custom_call.1} parent=1 // pred_fallthru
      _
    // Predicated region
    $region42: #{tpu_custom_call.1} parent=1 // pred_check
      _
    $region43: #{tpu_custom_call.1} parent=1 // pred_check_branch
      %1940 = sbr.rel (0) target = $region45
    $region44: #{tpu_custom_call.1} parent=1 // pred_region
      _
    $region45: #{tpu_custom_call.1} parent=1 // pred_fallthru
      _
    %1941 = vsyncpa [#allocation4], 1

</llo_original>
